<compile_context>
chip_gen: v6e
topology: v6e:2x2x1
jax: 0.10.0
libtpu: 0.0.40
codegen_flags: <defaults>
</compile_context>

<pallas_src>
import jax
import jax.numpy as jnp
from jax.experimental import pallas as pl
from jax.experimental.pallas import tpu as pltpu


def _sigmoid_mul_kernel(gate_ref, x_ref, o_ref):
    # gate_ref: (tc, 1)   x_ref: (tc, HW)   o_ref: (tc, HW)
    # Sigmoid of the tiny gate in f32 (EUP), then multiply in the feature
    # dtype so bf16 inputs stay bf16 on the VPU. For f32 inputs this is
    # identical to an all-f32 computation.
    g = jax.nn.sigmoid(gate_ref[...].astype(jnp.float32)).astype(x_ref.dtype)
    o_ref[...] = (x_ref[...] * g).astype(o_ref.dtype)


def _round_up(x, m):
    return (x + m - 1) // m * m


def sigmoid_mul(x481, x477, *, tc=None):
    """x481: (N, C, 1, 1) gate, x477: (N, C, H, W) features -> (N, C, H, W).

    Computes x477 * sigmoid(x481), matching the PyTorch module M.forward.
    """
    n, c, h, w = x477.shape
    assert x481.shape == (n, c, 1, 1)

    nc = n * c
    hw = h * w

    # Layout: (N*C, H*W) -- channels on the sublane axis, spatial on the lane
    # axis; gate is (N*C, 1) and broadcast across lanes inside the kernel.
    # Pure reshapes: zero data movement in the wrapper.
    x2d = x477.reshape(nc, hw)
    g2d = x481.reshape(nc, 1)

    if tc is None:
        # Two grid steps: negligible per-step overhead (vs. 15 steps at the
        # old tc=128) and shards the "parallel" axis across v7x's two
        # TensorCores. For nc=1824 this gives tc=912 (multiple of 8, divides
        # nc exactly -> no ragged block).
        tc = min(nc, _round_up(pl.cdiv(nc, 2), 8))
    tc = min(tc, _round_up(nc, 8))

    grid = (pl.cdiv(nc, tc),)

    out = pl.pallas_call(
        _sigmoid_mul_kernel,
        out_shape=jax.ShapeDtypeStruct((nc, hw), x477.dtype),
        grid_spec=pltpu.PrefetchScalarGridSpec(
            num_scalar_prefetch=0,
            grid=grid,
            in_specs=[
                pl.BlockSpec((tc, 1), lambda i: (i, 0)),    # gate
                pl.BlockSpec((tc, hw), lambda i: (i, 0)),   # features
            ],
            out_specs=pl.BlockSpec((tc, hw), lambda i: (i, 0)),
        ),
        compiler_params=pltpu.CompilerParams(
            dimension_semantics=("parallel",)),
    )(g2d, x2d)

    return out.reshape(n, c, h, w)


if __name__ == "__main__":
    key = jax.random.PRNGKey(0)
    k1, k2 = jax.random.split(key)

    # Shapes from the PyTorch module (already small enough to run directly).
    N, C, H, W = 1, 1824, 7, 7
    x477 = jax.random.normal(k1, (N, C, H, W), dtype=jnp.float32)
    x481 = jax.random.normal(k2, (N, C, 1, 1), dtype=jnp.float32)

    out = sigmoid_mul(x481, x477)
    out = jax.block_until_ready(out)

    # Reference check in plain JAX.
    ref = x477 * jax.nn.sigmoid(x481)
    assert out.shape == (N, C, H, W)
    assert jnp.allclose(out, ref, atol=1e-6, rtol=1e-6)

    # bf16 path (dtype-generic kernel): quick sanity check.
    out_bf16 = jax.block_until_ready(
        sigmoid_mul(x481.astype(jnp.bfloat16), x477.astype(jnp.bfloat16)))
    ref_bf16 = (x477.astype(jnp.bfloat16)
                * jax.nn.sigmoid(x481.astype(jnp.bfloat16).astype(jnp.float32)
                                 ).astype(jnp.bfloat16))
    assert jnp.allclose(out_bf16.astype(jnp.float32),
                        ref_bf16.astype(jnp.float32), atol=2e-2, rtol=2e-2)

    print("KERNEL_OK")
</pallas_src>

<mosaic_0001>
module attributes {stable_mosaic.version = 11 : i64} {
  func.func @_sigmoid_mul_kernel(%arg0: i32, %arg1: memref<912x1xf32, #tpu.memory_space<vmem>>, %arg2: memref<912x49xf32, #tpu.memory_space<vmem>>, %arg3: memref<912x49xf32, #tpu.memory_space<vmem>>) attributes {dimension_semantics = [#tpu.dimension_semantics<parallel>], iteration_bounds = array<i64: 2>, scalar_prefetch = 0 : i64, scratch_operands = 0 : i64, tpu.core_type = #tpu.core_type<tc>, window_params = [{transform_indices = @transform_0, window_bounds = array<i64: 912, 1>}, {transform_indices = @transform_1, window_bounds = array<i64: 912, 49>}, {transform_indices = @transform_2, window_bounds = array<i64: 912, 49>}]} {
    %c0 = arith.constant 0 : index
    %c0_0 = arith.constant 0 : index
    %0 = vector.load %arg1[%c0, %c0_0] : memref<912x1xf32, #tpu.memory_space<vmem>>, vector<912x1xf32>
    %1 = arith.negf %0 : vector<912x1xf32>
    %2 = math.exp %1 : vector<912x1xf32>
    %cst = arith.constant 1.000000e+00 : f32
    %3 = vector.broadcast %cst : f32 to vector<912x1xf32>
    %4 = arith.addf %3, %2 : vector<912x1xf32>
    %5 = arith.divf %3, %4 : vector<912x1xf32>
    %c0_1 = arith.constant 0 : index
    %c0_2 = arith.constant 0 : index
    %6 = vector.load %arg2[%c0_1, %c0_2] : memref<912x49xf32, #tpu.memory_space<vmem>>, vector<912x49xf32>
    %7 = vector.broadcast %5 : vector<912x1xf32> to vector<912x49xf32>
    %8 = arith.mulf %6, %7 : vector<912x49xf32>
    %c0_3 = arith.constant 0 : index
    %c0_4 = arith.constant 0 : index
    %9 = vector.load %arg3[%c0_3, %c0_4] : memref<912x49xf32, #tpu.memory_space<vmem>>, vector<912x49xf32>
    tpu.vector_store %arg3[%c0_3, %c0_4], %8 {strides = array<i32>} : memref<912x49xf32, #tpu.memory_space<vmem>>, vector<912x49xf32>,
    return
  }
  func.func @transform_0(%arg0: i32) -> (i32, i32) {
    %c0_i32 = arith.constant 0 : i32
    %c0_i32_0 = arith.constant 0 : i32
    return %arg0, %c0_i32 : i32, i32
  }
  func.func @transform_1(%arg0: i32) -> (i32, i32) {
    %c0_i32 = arith.constant 0 : i32
    %c0_i32_0 = arith.constant 0 : i32
    return %arg0, %c0_i32 : i32, i32
  }
  func.func @transform_2(%arg0: i32) -> (i32, i32) {
    %c0_i32 = arith.constant 0 : i32
    %c0_i32_0 = arith.constant 0 : i32
    return %arg0, %c0_i32 : i32, i32
  }
}

</mosaic_0001>

<llo_original>
// kernel: tpu_custom_call.1
$region0: #{tpu_custom_call.1}
  #allocation0 [shape = 'u32[]', space=smem, size = 0x4, offset = 0x4, fixed_abs, tag = 'smem constant byte address 0x4 - core index']
  #allocation1 [shape = 'u32[144,128]{1,0:T(1,128)}', space=vmem, size = 0x12000, scoped, tag = 'internal scratch']
  %s0 = inlined_call_operand.vmem [shape: f32[1824,1], index: 0, kind: input, shape index: {}]
  %s1 = inlined_call_operand.vmem [shape: f32[1824,49], index: 1, kind: input, shape index: {}]
  %s2 = inlined_call_operand.vmem [shape: f32[1824,49], index: 2, kind: output, shape index: {}]
  %s3 = sld [smem:[#allocation0]]
  $region41: #{tpu_custom_call.1} parent=0
    _
  %s5 = ssub.s32 1, %s3
  %s6 = scalar_select 0, %s5, %s3
  loop: start=0, step=1, limit=4
  $region2: #{tpu_custom_call.1} parent=0 // loop_pre_header
    _
  $region3: #{tpu_custom_call.1} parent=0 // loop_header
    %s8 = sphi 0, %s12
    %p9 = scmp.ge.s32.totalorder %s8, 4
    %s18 = sphi 0, %s20
    %s21 = sphi 0, %s18
    %s22 = sphi 0, %s21
    %s38 = sphi 0, %s22
    %s44 = sphi 0, %s46
    %s47 = sphi 0, %s44
    %s48 = sphi 0, %s47
    %s64 = sphi 0, %s48
    %s70 = sphi 0, %s72
    %s73 = sphi 0, %s70
    %s74 = sphi 0, %s73
    %s90 = sphi 0, %s74
  $region4: #{tpu_custom_call.1} parent=0 // loop_header_branch
    %11 = sbr.rel (%p9) target = $region8
  $region5: #{tpu_custom_call.1} parent=0 // loop_body
    %s13 = ssub.s32 %s8, 1
    %s14 = ssub.s32 %s8, 2
    %s15 = sadd.s32 %s8, 1
    %s16 = ssub.s32 %s8, %s15
    %p17 = scmp.eq.s32.totalorder %s16, 0
    %s19 = sadd.s32 %s18, 1
    %s20 = scalar_select %p17, %s18, %s19
    %p23 = pneg %p17
    %p24 = scmp.eq.s32.totalorder %s8, 1
    %p25 = por %p23, %p24
    %p26 = scmp.ne.s32.totalorder %s18, %s21
    %p27 = scmp.eq.s32.totalorder %s8, 0
    %p28 = por %p26, %p27
    %p29 = scmp.ne.s32.totalorder %s18, %s21
    %p30 = scmp.eq.s32.totalorder %s13, 1
    %p31 = por %p29, %p30
    %p32 = scmp.ne.s32.totalorder %s21, %s22
    %p33 = scmp.eq.s32.totalorder %s13, 0
    %p34 = por %p32, %p33
    %p35 = scmp.ne.s32.totalorder %s21, %s22
    %p36 = scmp.eq.s32.totalorder %s14, 1
    %p37 = por %p35, %p36
    %p39 = scmp.ne.s32.totalorder %s22, %s38
    %p40 = scmp.eq.s32.totalorder %s14, 0
    %p41 = por %p39, %p40
    %s42 = ssub.s32 %s8, %s15
    %p43 = scmp.eq.s32.totalorder %s42, 0
    %s45 = sadd.s32 %s44, 1
    %s46 = scalar_select %p43, %s44, %s45
    %p49 = pneg %p43
    %p50 = scmp.eq.s32.totalorder %s8, 1
    %p51 = por %p49, %p50
    %p52 = scmp.ne.s32.totalorder %s44, %s47
    %p53 = scmp.eq.s32.totalorder %s8, 0
    %p54 = por %p52, %p53
    %p55 = scmp.ne.s32.totalorder %s44, %s47
    %p56 = scmp.eq.s32.totalorder %s13, 1
    %p57 = por %p55, %p56
    %p58 = scmp.ne.s32.totalorder %s47, %s48
    %p59 = scmp.eq.s32.totalorder %s13, 0
    %p60 = por %p58, %p59
    %p61 = scmp.ne.s32.totalorder %s47, %s48
    %p62 = scmp.eq.s32.totalorder %s14, 1
    %p63 = por %p61, %p62
    %p65 = scmp.ne.s32.totalorder %s48, %s64
    %p66 = scmp.eq.s32.totalorder %s14, 0
    %p67 = por %p65, %p66
    %s68 = ssub.s32 %s8, %s15
    %p69 = scmp.eq.s32.totalorder %s68, 0
    %s71 = sadd.s32 %s70, 1
    %s72 = scalar_select %p69, %s70, %s71
    %p75 = pneg %p69
    %p76 = scmp.eq.s32.totalorder %s8, 1
    %p77 = por %p75, %p76
    %p78 = scmp.ne.s32.totalorder %s70, %s73
    %p79 = scmp.eq.s32.totalorder %s8, 0
    %p80 = por %p78, %p79
    %p81 = scmp.ne.s32.totalorder %s70, %s73
    %p82 = scmp.eq.s32.totalorder %s13, 1
    %p83 = por %p81, %p82
    %p84 = scmp.ne.s32.totalorder %s73, %s74
    %p85 = scmp.eq.s32.totalorder %s13, 0
    %p86 = por %p84, %p85
    %p87 = scmp.ne.s32.totalorder %s73, %s74
    %p88 = scmp.eq.s32.totalorder %s14, 1
    %p89 = por %p87, %p88
    %p91 = scmp.ne.s32.totalorder %s74, %s90
    %p92 = scmp.eq.s32.totalorder %s14, 0
    %p93 = por %p91, %p92
    %p94 = scmp.le.s32.totalorder 1, %s8
    %p95 = scmp.lt.s32.totalorder %s8, 3
    %p96 = pnand %p94, %p95
    %p97 = pneg %p96
    // Predicated region
    $region9: #{tpu_custom_call.1} parent=5 // pred_check
      _
    $region10: #{tpu_custom_call.1} parent=5 // pred_check_branch
      %99 = sbr.rel (%p96) target = $region12
    $region11: #{tpu_custom_call.1} parent=5 // pred_region
      %s100 = ssub.s32 %s8, 1
    $region12: #{tpu_custom_call.1} parent=5 // pred_fallthru
      _
    %p101 = scmp.lt.s32.totalorder %s8, 2
    // Predicated region
    $region13: #{tpu_custom_call.1} parent=5 // pred_check
      %p102 = pneg %p101
    $region14: #{tpu_custom_call.1} parent=5 // pred_check_branch
      %104 = sbr.rel (%p102) target = $region16
    $region15: #{tpu_custom_call.1} parent=5 // pred_region
      // Predicated region
      $region17: #{tpu_custom_call.1} parent=15 // pred_check
        %p105 = pneg %p28
      $region18: #{tpu_custom_call.1} parent=15 // pred_check_branch
        %107 = sbr.rel (%p105) target = $region20
      $region19: #{tpu_custom_call.1} parent=15 // pred_region
        %s108 = smul.u32 114, %s8
        %p109 = scmp.lt.s32.totalorder %s108, 227
        %s110 = scalar_select %p109, %s108, 227
        %s111 = smul.addr %s110, 8
        %s112 = scalar_lea.vmem %s0, %s111
        %s113 = smul.u32 114, %s8
      $region20: #{tpu_custom_call.1} parent=15 // pred_fallthru
        _
      // Predicated region
      $region21: #{tpu_custom_call.1} parent=15 // pred_check
        %p114 = pneg %p54
      $region22: #{tpu_custom_call.1} parent=15 // pred_check_branch
        %116 = sbr.rel (%p114) target = $region24
      $region23: #{tpu_custom_call.1} parent=15 // pred_region
        %s117 = smul.u32 114, %s8
        %p118 = scmp.lt.s32.totalorder %s117, 227
        %s119 = scalar_select %p118, %s117, 227
        %s120 = smul.addr %s119, 8
        %s121 = scalar_lea.vmem %s1, %s120
        %s122 = smul.u32 114, %s8
      $region24: #{tpu_custom_call.1} parent=15 // pred_fallthru
        _
    $region16: #{tpu_custom_call.1} parent=5 // pred_fallthru
      _
    %p123 = scmp.le.s32.totalorder 1, %s8
    %p124 = scmp.lt.s32.totalorder %s8, 3
    %p125 = pnand %p123, %p124
    %p126 = pneg %p125
    // Predicated region
    $region25: #{tpu_custom_call.1} parent=5 // pred_check
      _
    $region26: #{tpu_custom_call.1} parent=5 // pred_check_branch
      %128 = sbr.rel (%p125) target = $region28
    $region27: #{tpu_custom_call.1} parent=5 // pred_region
      %s129 = ssub.s32 %s8, 1
      %s130 = smul.u32 114, %s13
      %p131 = scmp.lt.s32.totalorder %s130, 227
      %s132 = scalar_select %p131, %s130, 227
      %s133 = smul.addr %s132, 8
      %s134 = scalar_lea.vmem %s0, %s133
      %p135 = pneg %p34
      %p136 = pneg %p31
      %s137 = smul.u32 114, %s13
      %p138 = scmp.lt.s32.totalorder %s137, 227
      %s139 = scalar_select %p138, %s137, 227
      %s140 = smul.addr %s139, 8
      %s141 = scalar_lea.vmem %s1, %s140
      %p142 = pneg %p60
      %p143 = pneg %p57
      %p144 = pneg %p86
      %p145 = pneg %p83
      %s146 = smul.u32 114, %s13
      %p147 = scmp.lt.s32.totalorder %s146, 227
      %s148 = scalar_select %p147, %s146, 227
      %s149 = smul.addr %s148, 8
      %s150 = scalar_lea.vmem %s2, %s149
      %s151 = smul.u32 114, %s13
      %p152 = scmp.lt.s32.totalorder %s151, 227
      %s153 = scalar_select %p152, %s151, 227
      %s154 = smul.addr %s153, 8
      %s155 = scalar_lea.vmem %s0, %s154
      %s156 = smul.u32 114, %s13
      %s157 = smul.u32 114, %s13
      %p158 = scmp.lt.s32.totalorder %s157, 227
      %s159 = scalar_select %p158, %s157, 227
      %s160 = smul.addr %s159, 8
      %s161 = scalar_lea.vmem %s1, %s160
      %s162 = smul.u32 114, %s13
      %s163 = smul.u32 114, %s13
      %p164 = scmp.lt.s32.totalorder %s163, 227
      %s165 = scalar_select %p164, %s163, 227
      %s166 = smul.addr %s165, 8
      %s167 = scalar_lea.vmem %s2, %s166
      %s168 = smul.u32 114, %s13
      %v169 = vld [vmem:[%s155] sm:$0xff]
      %v170 = vld [vmem:[%s155 + $0x8] sm:$0xff]
      %v171 = vld [vmem:[%s155 + $0x10] sm:$0xff]
      %v172 = vld [vmem:[%s155 + $0x18] sm:$0xff]
      %v173 = vld [vmem:[%s155 + $0x20] sm:$0xff]
      %v174 = vld [vmem:[%s155 + $0x28] sm:$0xff]
      %v175 = vld [vmem:[%s155 + $0x30] sm:$0xff]
      %v176 = vld [vmem:[%s155 + $0x38] sm:$0xff]
      %v177 = vld [vmem:[%s155 + $0x40] sm:$0xff]
      %v178 = vld [vmem:[%s155 + $0x48] sm:$0xff]
      %v179 = vld [vmem:[%s155 + $0x50] sm:$0xff]
      %v180 = vld [vmem:[%s155 + $0x58] sm:$0xff]
      %v181 = vld [vmem:[%s155 + $0x60] sm:$0xff]
      %v182 = vld [vmem:[%s155 + $0x68] sm:$0xff]
      %v183 = vld [vmem:[%s155 + $0x70] sm:$0xff]
      %v184 = vld [vmem:[%s155 + $0x78] sm:$0xff]
      %v185 = vld [vmem:[%s155 + $0x80] sm:$0xff]
      %v186 = vld [vmem:[%s155 + $0x88] sm:$0xff]
      %v187 = vld [vmem:[%s155 + $0x90] sm:$0xff]
      %v188 = vld [vmem:[%s155 + $0x98] sm:$0xff]
      %v189 = vld [vmem:[%s155 + $0xa0] sm:$0xff]
      %v190 = vld [vmem:[%s155 + $0xa8] sm:$0xff]
      %v191 = vld [vmem:[%s155 + $0xb0] sm:$0xff]
      %v192 = vld [vmem:[%s155 + $0xb8] sm:$0xff]
      %v193 = vld [vmem:[%s155 + $0xc0] sm:$0xff]
      %v194 = vld [vmem:[%s155 + $0xc8] sm:$0xff]
      %v195 = vld [vmem:[%s155 + $0xd0] sm:$0xff]
      %v196 = vld [vmem:[%s155 + $0xd8] sm:$0xff]
      %v197 = vld [vmem:[%s155 + $0xe0] sm:$0xff]
      %v198 = vld [vmem:[%s155 + $0xe8] sm:$0xff]
      %v199 = vld [vmem:[%s155 + $0xf0] sm:$0xff]
      %v200 = vld [vmem:[%s155 + $0xf8] sm:$0xff]
      %v201 = vld [vmem:[%s155 + $0x100] sm:$0xff]
      %v202 = vld [vmem:[%s155 + $0x108] sm:$0xff]
      %v203 = vld [vmem:[%s155 + $0x110] sm:$0xff]
      %v204 = vld [vmem:[%s155 + $0x118] sm:$0xff]
      %v205 = vld [vmem:[%s155 + $0x120] sm:$0xff]
      %v206 = vld [vmem:[%s155 + $0x128] sm:$0xff]
      %v207 = vld [vmem:[%s155 + $0x130] sm:$0xff]
      %v208 = vld [vmem:[%s155 + $0x138] sm:$0xff]
      %v209 = vld [vmem:[%s155 + $0x140] sm:$0xff]
      %v210 = vld [vmem:[%s155 + $0x148] sm:$0xff]
      %v211 = vld [vmem:[%s155 + $0x150] sm:$0xff]
      %v212 = vld [vmem:[%s155 + $0x158] sm:$0xff]
      %v213 = vld [vmem:[%s155 + $0x160] sm:$0xff]
      %v214 = vld [vmem:[%s155 + $0x168] sm:$0xff]
      %v215 = vld [vmem:[%s155 + $0x170] sm:$0xff]
      %v216 = vld [vmem:[%s155 + $0x178] sm:$0xff]
      %v217 = vld [vmem:[%s155 + $0x180] sm:$0xff]
      %v218 = vld [vmem:[%s155 + $0x188] sm:$0xff]
      %v219 = vld [vmem:[%s155 + $0x190] sm:$0xff]
      %v220 = vld [vmem:[%s155 + $0x198] sm:$0xff]
      %v221 = vld [vmem:[%s155 + $0x1a0] sm:$0xff]
      %v222 = vld [vmem:[%s155 + $0x1a8] sm:$0xff]
      %v223 = vld [vmem:[%s155 + $0x1b0] sm:$0xff]
      %v224 = vld [vmem:[%s155 + $0x1b8] sm:$0xff]
      %v225 = vld [vmem:[%s155 + $0x1c0] sm:$0xff]
      %v226 = vld [vmem:[%s155 + $0x1c8] sm:$0xff]
      %v227 = vld [vmem:[%s155 + $0x1d0] sm:$0xff]
      %v228 = vld [vmem:[%s155 + $0x1d8] sm:$0xff]
      %v229 = vld [vmem:[%s155 + $0x1e0] sm:$0xff]
      %v230 = vld [vmem:[%s155 + $0x1e8] sm:$0xff]
      %v231 = vld [vmem:[%s155 + $0x1f0] sm:$0xff]
      %v232 = vld [vmem:[%s155 + $0x1f8] sm:$0xff]
      %v233 = vld [vmem:[%s155 + $0x200] sm:$0xff]
      %v234 = vld [vmem:[%s155 + $0x208] sm:$0xff]
      %v235 = vld [vmem:[%s155 + $0x210] sm:$0xff]
      %v236 = vld [vmem:[%s155 + $0x218] sm:$0xff]
      %v237 = vld [vmem:[%s155 + $0x220] sm:$0xff]
      %v238 = vld [vmem:[%s155 + $0x228] sm:$0xff]
      %v239 = vld [vmem:[%s155 + $0x230] sm:$0xff]
      %v240 = vld [vmem:[%s155 + $0x238] sm:$0xff]
      %v241 = vld [vmem:[%s155 + $0x240] sm:$0xff]
      %v242 = vld [vmem:[%s155 + $0x248] sm:$0xff]
      %v243 = vld [vmem:[%s155 + $0x250] sm:$0xff]
      %v244 = vld [vmem:[%s155 + $0x258] sm:$0xff]
      %v245 = vld [vmem:[%s155 + $0x260] sm:$0xff]
      %v246 = vld [vmem:[%s155 + $0x268] sm:$0xff]
      %v247 = vld [vmem:[%s155 + $0x270] sm:$0xff]
      %v248 = vld [vmem:[%s155 + $0x278] sm:$0xff]
      %v249 = vld [vmem:[%s155 + $0x280] sm:$0xff]
      %v250 = vld [vmem:[%s155 + $0x288] sm:$0xff]
      %v251 = vld [vmem:[%s155 + $0x290] sm:$0xff]
      %v252 = vld [vmem:[%s155 + $0x298] sm:$0xff]
      %v253 = vld [vmem:[%s155 + $0x2a0] sm:$0xff]
      %v254 = vld [vmem:[%s155 + $0x2a8] sm:$0xff]
      %v255 = vld [vmem:[%s155 + $0x2b0] sm:$0xff]
      %v256 = vld [vmem:[%s155 + $0x2b8] sm:$0xff]
      %v257 = vld [vmem:[%s155 + $0x2c0] sm:$0xff]
      %v258 = vld [vmem:[%s155 + $0x2c8] sm:$0xff]
      %v259 = vld [vmem:[%s155 + $0x2d0] sm:$0xff]
      %v260 = vld [vmem:[%s155 + $0x2d8] sm:$0xff]
      %v261 = vld [vmem:[%s155 + $0x2e0] sm:$0xff]
      %v262 = vld [vmem:[%s155 + $0x2e8] sm:$0xff]
      %v263 = vld [vmem:[%s155 + $0x2f0] sm:$0xff]
      %v264 = vld [vmem:[%s155 + $0x2f8] sm:$0xff]
      %v265 = vld [vmem:[%s155 + $0x300] sm:$0xff]
      %v266 = vld [vmem:[%s155 + $0x308] sm:$0xff]
      %v267 = vld [vmem:[%s155 + $0x310] sm:$0xff]
      %v268 = vld [vmem:[%s155 + $0x318] sm:$0xff]
      %v269 = vld [vmem:[%s155 + $0x320] sm:$0xff]
      %v270 = vld [vmem:[%s155 + $0x328] sm:$0xff]
      %v271 = vld [vmem:[%s155 + $0x330] sm:$0xff]
      %v272 = vld [vmem:[%s155 + $0x338] sm:$0xff]
      %v273 = vld [vmem:[%s155 + $0x340] sm:$0xff]
      %v274 = vld [vmem:[%s155 + $0x348] sm:$0xff]
      %v275 = vld [vmem:[%s155 + $0x350] sm:$0xff]
      %v276 = vld [vmem:[%s155 + $0x358] sm:$0xff]
      %v277 = vld [vmem:[%s155 + $0x360] sm:$0xff]
      %v278 = vld [vmem:[%s155 + $0x368] sm:$0xff]
      %v279 = vld [vmem:[%s155 + $0x370] sm:$0xff]
      %v280 = vld [vmem:[%s155 + $0x378] sm:$0xff]
      %v281 = vld [vmem:[%s155 + $0x380] sm:$0xff]
      %v282 = vld [vmem:[%s155 + $0x388] sm:$0xff]
      %v283 = vxor.u32 %v169, 2147483648
      %v284 = vxor.u32 %v170, 2147483648
      %v285 = vxor.u32 %v171, 2147483648
      %v286 = vxor.u32 %v172, 2147483648
      %v287 = vxor.u32 %v173, 2147483648
      %v288 = vxor.u32 %v174, 2147483648
      %v289 = vxor.u32 %v175, 2147483648
      %v290 = vxor.u32 %v176, 2147483648
      %v291 = vxor.u32 %v177, 2147483648
      %v292 = vxor.u32 %v178, 2147483648
      %v293 = vxor.u32 %v179, 2147483648
      %v294 = vxor.u32 %v180, 2147483648
      %v295 = vxor.u32 %v181, 2147483648
      %v296 = vxor.u32 %v182, 2147483648
      %v297 = vxor.u32 %v183, 2147483648
      %v298 = vxor.u32 %v184, 2147483648
      %v299 = vxor.u32 %v185, 2147483648
      %v300 = vxor.u32 %v186, 2147483648
      %v301 = vxor.u32 %v187, 2147483648
      %v302 = vxor.u32 %v188, 2147483648
      %v303 = vxor.u32 %v189, 2147483648
      %v304 = vxor.u32 %v190, 2147483648
      %v305 = vxor.u32 %v191, 2147483648
      %v306 = vxor.u32 %v192, 2147483648
      %v307 = vxor.u32 %v193, 2147483648
      %v308 = vxor.u32 %v194, 2147483648
      %v309 = vxor.u32 %v195, 2147483648
      %v310 = vxor.u32 %v196, 2147483648
      %v311 = vxor.u32 %v197, 2147483648
      %v312 = vxor.u32 %v198, 2147483648
      %v313 = vxor.u32 %v199, 2147483648
      %v314 = vxor.u32 %v200, 2147483648
      %v315 = vxor.u32 %v201, 2147483648
      %v316 = vxor.u32 %v202, 2147483648
      %v317 = vxor.u32 %v203, 2147483648
      %v318 = vxor.u32 %v204, 2147483648
      %v319 = vxor.u32 %v205, 2147483648
      %v320 = vxor.u32 %v206, 2147483648
      %v321 = vxor.u32 %v207, 2147483648
      %v322 = vxor.u32 %v208, 2147483648
      %v323 = vxor.u32 %v209, 2147483648
      %v324 = vxor.u32 %v210, 2147483648
      %v325 = vxor.u32 %v211, 2147483648
      %v326 = vxor.u32 %v212, 2147483648
      %v327 = vxor.u32 %v213, 2147483648
      %v328 = vxor.u32 %v214, 2147483648
      %v329 = vxor.u32 %v215, 2147483648
      %v330 = vxor.u32 %v216, 2147483648
      %v331 = vxor.u32 %v217, 2147483648
      %v332 = vxor.u32 %v218, 2147483648
      %v333 = vxor.u32 %v219, 2147483648
      %v334 = vxor.u32 %v220, 2147483648
      %v335 = vxor.u32 %v221, 2147483648
      %v336 = vxor.u32 %v222, 2147483648
      %v337 = vxor.u32 %v223, 2147483648
      %v338 = vxor.u32 %v224, 2147483648
      %v339 = vxor.u32 %v225, 2147483648
      %v340 = vxor.u32 %v226, 2147483648
      %v341 = vxor.u32 %v227, 2147483648
      %v342 = vxor.u32 %v228, 2147483648
      %v343 = vxor.u32 %v229, 2147483648
      %v344 = vxor.u32 %v230, 2147483648
      %v345 = vxor.u32 %v231, 2147483648
      %v346 = vxor.u32 %v232, 2147483648
      %v347 = vxor.u32 %v233, 2147483648
      %v348 = vxor.u32 %v234, 2147483648
      %v349 = vxor.u32 %v235, 2147483648
      %v350 = vxor.u32 %v236, 2147483648
      %v351 = vxor.u32 %v237, 2147483648
      %v352 = vxor.u32 %v238, 2147483648
      %v353 = vxor.u32 %v239, 2147483648
      %v354 = vxor.u32 %v240, 2147483648
      %v355 = vxor.u32 %v241, 2147483648
      %v356 = vxor.u32 %v242, 2147483648
      %v357 = vxor.u32 %v243, 2147483648
      %v358 = vxor.u32 %v244, 2147483648
      %v359 = vxor.u32 %v245, 2147483648
      %v360 = vxor.u32 %v246, 2147483648
      %v361 = vxor.u32 %v247, 2147483648
      %v362 = vxor.u32 %v248, 2147483648
      %v363 = vxor.u32 %v249, 2147483648
      %v364 = vxor.u32 %v250, 2147483648
      %v365 = vxor.u32 %v251, 2147483648
      %v366 = vxor.u32 %v252, 2147483648
      %v367 = vxor.u32 %v253, 2147483648
      %v368 = vxor.u32 %v254, 2147483648
      %v369 = vxor.u32 %v255, 2147483648
      %v370 = vxor.u32 %v256, 2147483648
      %v371 = vxor.u32 %v257, 2147483648
      %v372 = vxor.u32 %v258, 2147483648
      %v373 = vxor.u32 %v259, 2147483648
      %v374 = vxor.u32 %v260, 2147483648
      %v375 = vxor.u32 %v261, 2147483648
      %v376 = vxor.u32 %v262, 2147483648
      %v377 = vxor.u32 %v263, 2147483648
      %v378 = vxor.u32 %v264, 2147483648
      %v379 = vxor.u32 %v265, 2147483648
      %v380 = vxor.u32 %v266, 2147483648
      %v381 = vxor.u32 %v267, 2147483648
      %v382 = vxor.u32 %v268, 2147483648
      %v383 = vxor.u32 %v269, 2147483648
      %v384 = vxor.u32 %v270, 2147483648
      %v385 = vxor.u32 %v271, 2147483648
      %v386 = vxor.u32 %v272, 2147483648
      %v387 = vxor.u32 %v273, 2147483648
      %v388 = vxor.u32 %v274, 2147483648
      %v389 = vxor.u32 %v275, 2147483648
      %v390 = vxor.u32 %v276, 2147483648
      %v391 = vxor.u32 %v277, 2147483648
      %v392 = vxor.u32 %v278, 2147483648
      %v393 = vxor.u32 %v279, 2147483648
      %v394 = vxor.u32 %v280, 2147483648
      %v395 = vxor.u32 %v281, 2147483648
      %v396 = vxor.u32 %v282, 2147483648
      %v397 = vmul.f32 %v283, 1.442695
      %v398 = vpow.pop %v397
      %v399 = vmul.f32 %v284, 1.442695
      %v400 = vpow.pop %v399
      %v401 = vmul.f32 %v285, 1.442695
      %v402 = vpow.pop %v401
      %v403 = vmul.f32 %v286, 1.442695
      %v404 = vpow.pop %v403
      %v405 = vmul.f32 %v287, 1.442695
      %v406 = vpow.pop %v405
      %v407 = vmul.f32 %v288, 1.442695
      %v408 = vpow.pop %v407
      %v409 = vmul.f32 %v289, 1.442695
      %v410 = vpow.pop %v409
      %v411 = vmul.f32 %v290, 1.442695
      %v412 = vpow.pop %v411
      %v413 = vmul.f32 %v291, 1.442695
      %v414 = vpow.pop %v413
      %v415 = vmul.f32 %v292, 1.442695
      %v416 = vpow.pop %v415
      %v417 = vmul.f32 %v293, 1.442695
      %v418 = vpow.pop %v417
      %v419 = vmul.f32 %v294, 1.442695
      %v420 = vpow.pop %v419
      %v421 = vmul.f32 %v295, 1.442695
      %v422 = vpow.pop %v421
      %v423 = vmul.f32 %v296, 1.442695
      %v424 = vpow.pop %v423
      %v425 = vmul.f32 %v297, 1.442695
      %v426 = vpow.pop %v425
      %v427 = vmul.f32 %v298, 1.442695
      %v428 = vpow.pop %v427
      %v429 = vmul.f32 %v299, 1.442695
      %v430 = vpow.pop %v429
      %v431 = vmul.f32 %v300, 1.442695
      %v432 = vpow.pop %v431
      %v433 = vmul.f32 %v301, 1.442695
      %v434 = vpow.pop %v433
      %v435 = vmul.f32 %v302, 1.442695
      %v436 = vpow.pop %v435
      %v437 = vmul.f32 %v303, 1.442695
      %v438 = vpow.pop %v437
      %v439 = vmul.f32 %v304, 1.442695
      %v440 = vpow.pop %v439
      %v441 = vmul.f32 %v305, 1.442695
      %v442 = vpow.pop %v441
      %v443 = vmul.f32 %v306, 1.442695
      %v444 = vpow.pop %v443
      %v445 = vmul.f32 %v307, 1.442695
      %v446 = vpow.pop %v445
      %v447 = vmul.f32 %v308, 1.442695
      %v448 = vpow.pop %v447
      %v449 = vmul.f32 %v309, 1.442695
      %v450 = vpow.pop %v449
      %v451 = vmul.f32 %v310, 1.442695
      %v452 = vpow.pop %v451
      %v453 = vmul.f32 %v311, 1.442695
      %v454 = vpow.pop %v453
      %v455 = vmul.f32 %v312, 1.442695
      %v456 = vpow.pop %v455
      %v457 = vmul.f32 %v313, 1.442695
      %v458 = vpow.pop %v457
      %v459 = vmul.f32 %v314, 1.442695
      %v460 = vpow.pop %v459
      %v461 = vmul.f32 %v315, 1.442695
      %v462 = vpow.pop %v461
      %v463 = vmul.f32 %v316, 1.442695
      %v464 = vpow.pop %v463
      %v465 = vmul.f32 %v317, 1.442695
      %v466 = vpow.pop %v465
      %v467 = vmul.f32 %v318, 1.442695
      %v468 = vpow.pop %v467
      %v469 = vmul.f32 %v319, 1.442695
      %v470 = vpow.pop %v469
      %v471 = vmul.f32 %v320, 1.442695
      %v472 = vpow.pop %v471
      %v473 = vmul.f32 %v321, 1.442695
      %v474 = vpow.pop %v473
      %v475 = vmul.f32 %v322, 1.442695
      %v476 = vpow.pop %v475
      %v477 = vmul.f32 %v323, 1.442695
      %v478 = vpow.pop %v477
      %v479 = vmul.f32 %v324, 1.442695
      %v480 = vpow.pop %v479
      %v481 = vmul.f32 %v325, 1.442695
      %v482 = vpow.pop %v481
      %v483 = vmul.f32 %v326, 1.442695
      %v484 = vpow.pop %v483
      %v485 = vmul.f32 %v327, 1.442695
      %v486 = vpow.pop %v485
      %v487 = vmul.f32 %v328, 1.442695
      %v488 = vpow.pop %v487
      %v489 = vmul.f32 %v329, 1.442695
      %v490 = vpow.pop %v489
      %v491 = vmul.f32 %v330, 1.442695
      %v492 = vpow.pop %v491
      %v493 = vmul.f32 %v331, 1.442695
      %v494 = vpow.pop %v493
      %v495 = vmul.f32 %v332, 1.442695
      %v496 = vpow.pop %v495
      %v497 = vmul.f32 %v333, 1.442695
      %v498 = vpow.pop %v497
      %v499 = vmul.f32 %v334, 1.442695
      %v500 = vpow.pop %v499
      %v501 = vmul.f32 %v335, 1.442695
      %v502 = vpow.pop %v501
      %v503 = vmul.f32 %v336, 1.442695
      %v504 = vpow.pop %v503
      %v505 = vmul.f32 %v337, 1.442695
      %v506 = vpow.pop %v505
      %v507 = vmul.f32 %v338, 1.442695
      %v508 = vpow.pop %v507
      %v509 = vmul.f32 %v339, 1.442695
      %v510 = vpow.pop %v509
      %v511 = vmul.f32 %v340, 1.442695
      %v512 = vpow.pop %v511
      %v513 = vmul.f32 %v341, 1.442695
      %v514 = vpow.pop %v513
      %v515 = vmul.f32 %v342, 1.442695
      %v516 = vpow.pop %v515
      %v517 = vmul.f32 %v343, 1.442695
      %v518 = vpow.pop %v517
      %v519 = vmul.f32 %v344, 1.442695
      %v520 = vpow.pop %v519
      %v521 = vmul.f32 %v345, 1.442695
      %v522 = vpow.pop %v521
      %v523 = vmul.f32 %v346, 1.442695
      %v524 = vpow.pop %v523
      %v525 = vmul.f32 %v347, 1.442695
      %v526 = vpow.pop %v525
      %v527 = vmul.f32 %v348, 1.442695
      %v528 = vpow.pop %v527
      %v529 = vmul.f32 %v349, 1.442695
      %v530 = vpow.pop %v529
      %v531 = vmul.f32 %v350, 1.442695
      %v532 = vpow.pop %v531
      %v533 = vmul.f32 %v351, 1.442695
      %v534 = vpow.pop %v533
      %v535 = vmul.f32 %v352, 1.442695
      %v536 = vpow.pop %v535
      %v537 = vmul.f32 %v353, 1.442695
      %v538 = vpow.pop %v537
      %v539 = vmul.f32 %v354, 1.442695
      %v540 = vpow.pop %v539
      %v541 = vmul.f32 %v355, 1.442695
      %v542 = vpow.pop %v541
      %v543 = vmul.f32 %v356, 1.442695
      %v544 = vpow.pop %v543
      %v545 = vmul.f32 %v357, 1.442695
      %v546 = vpow.pop %v545
      %v547 = vmul.f32 %v358, 1.442695
      %v548 = vpow.pop %v547
      %v549 = vmul.f32 %v359, 1.442695
      %v550 = vpow.pop %v549
      %v551 = vmul.f32 %v360, 1.442695
      %v552 = vpow.pop %v551
      %v553 = vmul.f32 %v361, 1.442695
      %v554 = vpow.pop %v553
      %v555 = vmul.f32 %v362, 1.442695
      %v556 = vpow.pop %v555
      %v557 = vmul.f32 %v363, 1.442695
      %v558 = vpow.pop %v557
      %v559 = vmul.f32 %v364, 1.442695
      %v560 = vpow.pop %v559
      %v561 = vmul.f32 %v365, 1.442695
      %v562 = vpow.pop %v561
      %v563 = vmul.f32 %v366, 1.442695
      %v564 = vpow.pop %v563
      %v565 = vmul.f32 %v367, 1.442695
      %v566 = vpow.pop %v565
      %v567 = vmul.f32 %v368, 1.442695
      %v568 = vpow.pop %v567
      %v569 = vmul.f32 %v369, 1.442695
      %v570 = vpow.pop %v569
      %v571 = vmul.f32 %v370, 1.442695
      %v572 = vpow.pop %v571
      %v573 = vmul.f32 %v371, 1.442695
      %v574 = vpow.pop %v573
      %v575 = vmul.f32 %v372, 1.442695
      %v576 = vpow.pop %v575
      %v577 = vmul.f32 %v373, 1.442695
      %v578 = vpow.pop %v577
      %v579 = vmul.f32 %v374, 1.442695
      %v580 = vpow.pop %v579
      %v581 = vmul.f32 %v375, 1.442695
      %v582 = vpow.pop %v581
      %v583 = vmul.f32 %v376, 1.442695
      %v584 = vpow.pop %v583
      %v585 = vmul.f32 %v377, 1.442695
      %v586 = vpow.pop %v585
      %v587 = vmul.f32 %v378, 1.442695
      %v588 = vpow.pop %v587
      %v589 = vmul.f32 %v379, 1.442695
      %v590 = vpow.pop %v589
      %v591 = vmul.f32 %v380, 1.442695
      %v592 = vpow.pop %v591
      %v593 = vmul.f32 %v381, 1.442695
      %v594 = vpow.pop %v593
      %v595 = vmul.f32 %v382, 1.442695
      %v596 = vpow.pop %v595
      %v597 = vmul.f32 %v383, 1.442695
      %v598 = vpow.pop %v597
      %v599 = vmul.f32 %v384, 1.442695
      %v600 = vpow.pop %v599
      %v601 = vmul.f32 %v385, 1.442695
      %v602 = vpow.pop %v601
      %v603 = vmul.f32 %v386, 1.442695
      %v604 = vpow.pop %v603
      %v605 = vmul.f32 %v387, 1.442695
      %v606 = vpow.pop %v605
      %v607 = vmul.f32 %v388, 1.442695
      %v608 = vpow.pop %v607
      %v609 = vmul.f32 %v389, 1.442695
      %v610 = vpow.pop %v609
      %v611 = vmul.f32 %v390, 1.442695
      %v612 = vpow.pop %v611
      %v613 = vmul.f32 %v391, 1.442695
      %v614 = vpow.pop %v613
      %v615 = vmul.f32 %v392, 1.442695
      %v616 = vpow.pop %v615
      %v617 = vmul.f32 %v393, 1.442695
      %v618 = vpow.pop %v617
      %v619 = vmul.f32 %v394, 1.442695
      %v620 = vpow.pop %v619
      %v621 = vmul.f32 %v395, 1.442695
      %v622 = vpow.pop %v621
      %v623 = vmul.f32 %v396, 1.442695
      %v624 = vpow.pop %v623
      %v625 = vadd.f32 %v398, 1.0
      %v626 = vadd.f32 %v400, 1.0
      %v627 = vadd.f32 %v402, 1.0
      %v628 = vadd.f32 %v404, 1.0
      %v629 = vadd.f32 %v406, 1.0
      %v630 = vadd.f32 %v408, 1.0
      %v631 = vadd.f32 %v410, 1.0
      %v632 = vadd.f32 %v412, 1.0
      %v633 = vadd.f32 %v414, 1.0
      %v634 = vadd.f32 %v416, 1.0
      %v635 = vadd.f32 %v418, 1.0
      %v636 = vadd.f32 %v420, 1.0
      %v637 = vadd.f32 %v422, 1.0
      %v638 = vadd.f32 %v424, 1.0
      %v639 = vadd.f32 %v426, 1.0
      %v640 = vadd.f32 %v428, 1.0
      %v641 = vadd.f32 %v430, 1.0
      %v642 = vadd.f32 %v432, 1.0
      %v643 = vadd.f32 %v434, 1.0
      %v644 = vadd.f32 %v436, 1.0
      %v645 = vadd.f32 %v438, 1.0
      %v646 = vadd.f32 %v440, 1.0
      %v647 = vadd.f32 %v442, 1.0
      %v648 = vadd.f32 %v444, 1.0
      %v649 = vadd.f32 %v446, 1.0
      %v650 = vadd.f32 %v448, 1.0
      %v651 = vadd.f32 %v450, 1.0
      %v652 = vadd.f32 %v452, 1.0
      %v653 = vadd.f32 %v454, 1.0
      %v654 = vadd.f32 %v456, 1.0
      %v655 = vadd.f32 %v458, 1.0
      %v656 = vadd.f32 %v460, 1.0
      %v657 = vadd.f32 %v462, 1.0
      %v658 = vadd.f32 %v464, 1.0
      %v659 = vadd.f32 %v466, 1.0
      %v660 = vadd.f32 %v468, 1.0
      %v661 = vadd.f32 %v470, 1.0
      %v662 = vadd.f32 %v472, 1.0
      %v663 = vadd.f32 %v474, 1.0
      %v664 = vadd.f32 %v476, 1.0
      %v665 = vadd.f32 %v478, 1.0
      %v666 = vadd.f32 %v480, 1.0
      %v667 = vadd.f32 %v482, 1.0
      %v668 = vadd.f32 %v484, 1.0
      %v669 = vadd.f32 %v486, 1.0
      %v670 = vadd.f32 %v488, 1.0
      %v671 = vadd.f32 %v490, 1.0
      %v672 = vadd.f32 %v492, 1.0
      %v673 = vadd.f32 %v494, 1.0
      %v674 = vadd.f32 %v496, 1.0
      %v675 = vadd.f32 %v498, 1.0
      %v676 = vadd.f32 %v500, 1.0
      %v677 = vadd.f32 %v502, 1.0
      %v678 = vadd.f32 %v504, 1.0
      %v679 = vadd.f32 %v506, 1.0
      %v680 = vadd.f32 %v508, 1.0
      %v681 = vadd.f32 %v510, 1.0
      %v682 = vadd.f32 %v512, 1.0
      %v683 = vadd.f32 %v514, 1.0
      %v684 = vadd.f32 %v516, 1.0
      %v685 = vadd.f32 %v518, 1.0
      %v686 = vadd.f32 %v520, 1.0
      %v687 = vadd.f32 %v522, 1.0
      %v688 = vadd.f32 %v524, 1.0
      %v689 = vadd.f32 %v526, 1.0
      %v690 = vadd.f32 %v528, 1.0
      %v691 = vadd.f32 %v530, 1.0
      %v692 = vadd.f32 %v532, 1.0
      %v693 = vadd.f32 %v534, 1.0
      %v694 = vadd.f32 %v536, 1.0
      %v695 = vadd.f32 %v538, 1.0
      %v696 = vadd.f32 %v540, 1.0
      %v697 = vadd.f32 %v542, 1.0
      %v698 = vadd.f32 %v544, 1.0
      %v699 = vadd.f32 %v546, 1.0
      %v700 = vadd.f32 %v548, 1.0
      %v701 = vadd.f32 %v550, 1.0
      %v702 = vadd.f32 %v552, 1.0
      %v703 = vadd.f32 %v554, 1.0
      %v704 = vadd.f32 %v556, 1.0
      %v705 = vadd.f32 %v558, 1.0
      %v706 = vadd.f32 %v560, 1.0
      %v707 = vadd.f32 %v562, 1.0
      %v708 = vadd.f32 %v564, 1.0
      %v709 = vadd.f32 %v566, 1.0
      %v710 = vadd.f32 %v568, 1.0
      %v711 = vadd.f32 %v570, 1.0
      %v712 = vadd.f32 %v572, 1.0
      %v713 = vadd.f32 %v574, 1.0
      %v714 = vadd.f32 %v576, 1.0
      %v715 = vadd.f32 %v578, 1.0
      %v716 = vadd.f32 %v580, 1.0
      %v717 = vadd.f32 %v582, 1.0
      %v718 = vadd.f32 %v584, 1.0
      %v719 = vadd.f32 %v586, 1.0
      %v720 = vadd.f32 %v588, 1.0
      %v721 = vadd.f32 %v590, 1.0
      %v722 = vadd.f32 %v592, 1.0
      %v723 = vadd.f32 %v594, 1.0
      %v724 = vadd.f32 %v596, 1.0
      %v725 = vadd.f32 %v598, 1.0
      %v726 = vadd.f32 %v600, 1.0
      %v727 = vadd.f32 %v602, 1.0
      %v728 = vadd.f32 %v604, 1.0
      %v729 = vadd.f32 %v606, 1.0
      %v730 = vadd.f32 %v608, 1.0
      %v731 = vadd.f32 %v610, 1.0
      %v732 = vadd.f32 %v612, 1.0
      %v733 = vadd.f32 %v614, 1.0
      %v734 = vadd.f32 %v616, 1.0
      %v735 = vadd.f32 %v618, 1.0
      %v736 = vadd.f32 %v620, 1.0
      %v737 = vadd.f32 %v622, 1.0
      %v738 = vadd.f32 %v624, 1.0
      %v739 = vrcp.pop %v625
      %v740 = vmul.f32 1.0, %v739
      %v741 = vrcp.pop %v626
      %v742 = vmul.f32 1.0, %v741
      %v743 = vrcp.pop %v627
      %v744 = vmul.f32 1.0, %v743
      %v745 = vrcp.pop %v628
      %v746 = vmul.f32 1.0, %v745
      %v747 = vrcp.pop %v629
      %v748 = vmul.f32 1.0, %v747
      %v749 = vrcp.pop %v630
      %v750 = vmul.f32 1.0, %v749
      %v751 = vrcp.pop %v631
      %v752 = vmul.f32 1.0, %v751
      %v753 = vrcp.pop %v632
      %v754 = vmul.f32 1.0, %v753
      %v755 = vrcp.pop %v633
      %v756 = vmul.f32 1.0, %v755
      %v757 = vrcp.pop %v634
      %v758 = vmul.f32 1.0, %v757
      %v759 = vrcp.pop %v635
      %v760 = vmul.f32 1.0, %v759
      %v761 = vrcp.pop %v636
      %v762 = vmul.f32 1.0, %v761
      %v763 = vrcp.pop %v637
      %v764 = vmul.f32 1.0, %v763
      %v765 = vrcp.pop %v638
      %v766 = vmul.f32 1.0, %v765
      %v767 = vrcp.pop %v639
      %v768 = vmul.f32 1.0, %v767
      %v769 = vrcp.pop %v640
      %v770 = vmul.f32 1.0, %v769
      %v771 = vrcp.pop %v641
      %v772 = vmul.f32 1.0, %v771
      %v773 = vrcp.pop %v642
      %v774 = vmul.f32 1.0, %v773
      %v775 = vrcp.pop %v643
      %v776 = vmul.f32 1.0, %v775
      %v777 = vrcp.pop %v644
      %v778 = vmul.f32 1.0, %v777
      %v779 = vrcp.pop %v645
      %v780 = vmul.f32 1.0, %v779
      %v781 = vrcp.pop %v646
      %v782 = vmul.f32 1.0, %v781
      %v783 = vrcp.pop %v647
      %v784 = vmul.f32 1.0, %v783
      %v785 = vrcp.pop %v648
      %v786 = vmul.f32 1.0, %v785
      %v787 = vrcp.pop %v649
      %v788 = vmul.f32 1.0, %v787
      %v789 = vrcp.pop %v650
      %v790 = vmul.f32 1.0, %v789
      %v791 = vrcp.pop %v651
      %v792 = vmul.f32 1.0, %v791
      %v793 = vrcp.pop %v652
      %v794 = vmul.f32 1.0, %v793
      %v795 = vrcp.pop %v653
      %v796 = vmul.f32 1.0, %v795
      %v797 = vrcp.pop %v654
      %v798 = vmul.f32 1.0, %v797
      %v799 = vrcp.pop %v655
      %v800 = vmul.f32 1.0, %v799
      %v801 = vrcp.pop %v656
      %v802 = vmul.f32 1.0, %v801
      %v803 = vrcp.pop %v657
      %v804 = vmul.f32 1.0, %v803
      %v805 = vrcp.pop %v658
      %v806 = vmul.f32 1.0, %v805
      %v807 = vrcp.pop %v659
      %v808 = vmul.f32 1.0, %v807
      %v809 = vrcp.pop %v660
      %v810 = vmul.f32 1.0, %v809
      %v811 = vrcp.pop %v661
      %v812 = vmul.f32 1.0, %v811
      %v813 = vrcp.pop %v662
      %v814 = vmul.f32 1.0, %v813
      %v815 = vrcp.pop %v663
      %v816 = vmul.f32 1.0, %v815
      %v817 = vrcp.pop %v664
      %v818 = vmul.f32 1.0, %v817
      %v819 = vrcp.pop %v665
      %v820 = vmul.f32 1.0, %v819
      %v821 = vrcp.pop %v666
      %v822 = vmul.f32 1.0, %v821
      %v823 = vrcp.pop %v667
      %v824 = vmul.f32 1.0, %v823
      %v825 = vrcp.pop %v668
      %v826 = vmul.f32 1.0, %v825
      %v827 = vrcp.pop %v669
      %v828 = vmul.f32 1.0, %v827
      %v829 = vrcp.pop %v670
      %v830 = vmul.f32 1.0, %v829
      %v831 = vrcp.pop %v671
      %v832 = vmul.f32 1.0, %v831
      %v833 = vrcp.pop %v672
      %v834 = vmul.f32 1.0, %v833
      %v835 = vrcp.pop %v673
      %v836 = vmul.f32 1.0, %v835
      %v837 = vrcp.pop %v674
      %v838 = vmul.f32 1.0, %v837
      %v839 = vrcp.pop %v675
      %v840 = vmul.f32 1.0, %v839
      %v841 = vrcp.pop %v676
      %v842 = vmul.f32 1.0, %v841
      %v843 = vrcp.pop %v677
      %v844 = vmul.f32 1.0, %v843
      %v845 = vrcp.pop %v678
      %v846 = vmul.f32 1.0, %v845
      %v847 = vrcp.pop %v679
      %v848 = vmul.f32 1.0, %v847
      %v849 = vrcp.pop %v680
      %v850 = vmul.f32 1.0, %v849
      %v851 = vrcp.pop %v681
      %v852 = vmul.f32 1.0, %v851
      %v853 = vrcp.pop %v682
      %v854 = vmul.f32 1.0, %v853
      %v855 = vrcp.pop %v683
      %v856 = vmul.f32 1.0, %v855
      %v857 = vrcp.pop %v684
      %v858 = vmul.f32 1.0, %v857
      %v859 = vrcp.pop %v685
      %v860 = vmul.f32 1.0, %v859
      %v861 = vrcp.pop %v686
      %v862 = vmul.f32 1.0, %v861
      %v863 = vrcp.pop %v687
      %v864 = vmul.f32 1.0, %v863
      %v865 = vrcp.pop %v688
      %v866 = vmul.f32 1.0, %v865
      %v867 = vrcp.pop %v689
      %v868 = vmul.f32 1.0, %v867
      %v869 = vrcp.pop %v690
      %v870 = vmul.f32 1.0, %v869
      %v871 = vrcp.pop %v691
      %v872 = vmul.f32 1.0, %v871
      %v873 = vrcp.pop %v692
      %v874 = vmul.f32 1.0, %v873
      %v875 = vrcp.pop %v693
      %v876 = vmul.f32 1.0, %v875
      %v877 = vrcp.pop %v694
      %v878 = vmul.f32 1.0, %v877
      %v879 = vrcp.pop %v695
      %v880 = vmul.f32 1.0, %v879
      %v881 = vrcp.pop %v696
      %v882 = vmul.f32 1.0, %v881
      %v883 = vrcp.pop %v697
      %v884 = vmul.f32 1.0, %v883
      %v885 = vrcp.pop %v698
      %v886 = vmul.f32 1.0, %v885
      %v887 = vrcp.pop %v699
      %v888 = vmul.f32 1.0, %v887
      %v889 = vrcp.pop %v700
      %v890 = vmul.f32 1.0, %v889
      %v891 = vrcp.pop %v701
      %v892 = vmul.f32 1.0, %v891
      %v893 = vrcp.pop %v702
      %v894 = vmul.f32 1.0, %v893
      %v895 = vrcp.pop %v703
      %v896 = vmul.f32 1.0, %v895
      %v897 = vrcp.pop %v704
      %v898 = vmul.f32 1.0, %v897
      %v899 = vrcp.pop %v705
      %v900 = vmul.f32 1.0, %v899
      %v901 = vrcp.pop %v706
      %v902 = vmul.f32 1.0, %v901
      %v903 = vrcp.pop %v707
      %v904 = vmul.f32 1.0, %v903
      %v905 = vrcp.pop %v708
      %v906 = vmul.f32 1.0, %v905
      %v907 = vrcp.pop %v709
      %v908 = vmul.f32 1.0, %v907
      %v909 = vrcp.pop %v710
      %v910 = vmul.f32 1.0, %v909
      %v911 = vrcp.pop %v711
      %v912 = vmul.f32 1.0, %v911
      %v913 = vrcp.pop %v712
      %v914 = vmul.f32 1.0, %v913
      %v915 = vrcp.pop %v713
      %v916 = vmul.f32 1.0, %v915
      %v917 = vrcp.pop %v714
      %v918 = vmul.f32 1.0, %v917
      %v919 = vrcp.pop %v715
      %v920 = vmul.f32 1.0, %v919
      %v921 = vrcp.pop %v716
      %v922 = vmul.f32 1.0, %v921
      %v923 = vrcp.pop %v717
      %v924 = vmul.f32 1.0, %v923
      %v925 = vrcp.pop %v718
      %v926 = vmul.f32 1.0, %v925
      %v927 = vrcp.pop %v719
      %v928 = vmul.f32 1.0, %v927
      %v929 = vrcp.pop %v720
      %v930 = vmul.f32 1.0, %v929
      %v931 = vrcp.pop %v721
      %v932 = vmul.f32 1.0, %v931
      %v933 = vrcp.pop %v722
      %v934 = vmul.f32 1.0, %v933
      %v935 = vrcp.pop %v723
      %v936 = vmul.f32 1.0, %v935
      %v937 = vrcp.pop %v724
      %v938 = vmul.f32 1.0, %v937
      %v939 = vrcp.pop %v725
      %v940 = vmul.f32 1.0, %v939
      %v941 = vrcp.pop %v726
      %v942 = vmul.f32 1.0, %v941
      %v943 = vrcp.pop %v727
      %v944 = vmul.f32 1.0, %v943
      %v945 = vrcp.pop %v728
      %v946 = vmul.f32 1.0, %v945
      %v947 = vrcp.pop %v729
      %v948 = vmul.f32 1.0, %v947
      %v949 = vrcp.pop %v730
      %v950 = vmul.f32 1.0, %v949
      %v951 = vrcp.pop %v731
      %v952 = vmul.f32 1.0, %v951
      %v953 = vrcp.pop %v732
      %v954 = vmul.f32 1.0, %v953
      %v955 = vrcp.pop %v733
      %v956 = vmul.f32 1.0, %v955
      %v957 = vrcp.pop %v734
      %v958 = vmul.f32 1.0, %v957
      %v959 = vrcp.pop %v735
      %v960 = vmul.f32 1.0, %v959
      %v961 = vrcp.pop %v736
      %v962 = vmul.f32 1.0, %v961
      %v963 = vrcp.pop %v737
      %v964 = vmul.f32 1.0, %v963
      %v965 = vrcp.pop %v738
      %v966 = vmul.f32 1.0, %v965
      %v967 = vld [vmem:[%s161] sm:$0xff]
      %v968 = vld [vmem:[%s161 + $0x8] sm:$0xff]
      %v969 = vld [vmem:[%s161 + $0x10] sm:$0xff]
      %v970 = vld [vmem:[%s161 + $0x18] sm:$0xff]
      %v971 = vld [vmem:[%s161 + $0x20] sm:$0xff]
      %v972 = vld [vmem:[%s161 + $0x28] sm:$0xff]
      %v973 = vld [vmem:[%s161 + $0x30] sm:$0xff]
      %v974 = vld [vmem:[%s161 + $0x38] sm:$0xff]
      %v975 = vld [vmem:[%s161 + $0x40] sm:$0xff]
      %v976 = vld [vmem:[%s161 + $0x48] sm:$0xff]
      %v977 = vld [vmem:[%s161 + $0x50] sm:$0xff]
      %v978 = vld [vmem:[%s161 + $0x58] sm:$0xff]
      %v979 = vld [vmem:[%s161 + $0x60] sm:$0xff]
      %v980 = vld [vmem:[%s161 + $0x68] sm:$0xff]
      %v981 = vld [vmem:[%s161 + $0x70] sm:$0xff]
      %v982 = vld [vmem:[%s161 + $0x78] sm:$0xff]
      %v983 = vld [vmem:[%s161 + $0x80] sm:$0xff]
      %v984 = vld [vmem:[%s161 + $0x88] sm:$0xff]
      %v985 = vld [vmem:[%s161 + $0x90] sm:$0xff]
      %v986 = vld [vmem:[%s161 + $0x98] sm:$0xff]
      %v987 = vld [vmem:[%s161 + $0xa0] sm:$0xff]
      %v988 = vld [vmem:[%s161 + $0xa8] sm:$0xff]
      %v989 = vld [vmem:[%s161 + $0xb0] sm:$0xff]
      %v990 = vld [vmem:[%s161 + $0xb8] sm:$0xff]
      %v991 = vld [vmem:[%s161 + $0xc0] sm:$0xff]
      %v992 = vld [vmem:[%s161 + $0xc8] sm:$0xff]
      %v993 = vld [vmem:[%s161 + $0xd0] sm:$0xff]
      %v994 = vld [vmem:[%s161 + $0xd8] sm:$0xff]
      %v995 = vld [vmem:[%s161 + $0xe0] sm:$0xff]
      %v996 = vld [vmem:[%s161 + $0xe8] sm:$0xff]
      %v997 = vld [vmem:[%s161 + $0xf0] sm:$0xff]
      %v998 = vld [vmem:[%s161 + $0xf8] sm:$0xff]
      %v999 = vld [vmem:[%s161 + $0x100] sm:$0xff]
      %v1000 = vld [vmem:[%s161 + $0x108] sm:$0xff]
      %v1001 = vld [vmem:[%s161 + $0x110] sm:$0xff]
      %v1002 = vld [vmem:[%s161 + $0x118] sm:$0xff]
      %v1003 = vld [vmem:[%s161 + $0x120] sm:$0xff]
      %v1004 = vld [vmem:[%s161 + $0x128] sm:$0xff]
      %v1005 = vld [vmem:[%s161 + $0x130] sm:$0xff]
      %v1006 = vld [vmem:[%s161 + $0x138] sm:$0xff]
      %v1007 = vld [vmem:[%s161 + $0x140] sm:$0xff]
      %v1008 = vld [vmem:[%s161 + $0x148] sm:$0xff]
      %v1009 = vld [vmem:[%s161 + $0x150] sm:$0xff]
      %v1010 = vld [vmem:[%s161 + $0x158] sm:$0xff]
      %v1011 = vld [vmem:[%s161 + $0x160] sm:$0xff]
      %v1012 = vld [vmem:[%s161 + $0x168] sm:$0xff]
      %v1013 = vld [vmem:[%s161 + $0x170] sm:$0xff]
      %v1014 = vld [vmem:[%s161 + $0x178] sm:$0xff]
      %v1015 = vld [vmem:[%s161 + $0x180] sm:$0xff]
      %v1016 = vld [vmem:[%s161 + $0x188] sm:$0xff]
      %v1017 = vld [vmem:[%s161 + $0x190] sm:$0xff]
      %v1018 = vld [vmem:[%s161 + $0x198] sm:$0xff]
      %v1019 = vld [vmem:[%s161 + $0x1a0] sm:$0xff]
      %v1020 = vld [vmem:[%s161 + $0x1a8] sm:$0xff]
      %v1021 = vld [vmem:[%s161 + $0x1b0] sm:$0xff]
      %v1022 = vld [vmem:[%s161 + $0x1b8] sm:$0xff]
      %v1023 = vld [vmem:[%s161 + $0x1c0] sm:$0xff]
      %v1024 = vld [vmem:[%s161 + $0x1c8] sm:$0xff]
      %v1025 = vld [vmem:[%s161 + $0x1d0] sm:$0xff]
      %v1026 = vld [vmem:[%s161 + $0x1d8] sm:$0xff]
      %v1027 = vld [vmem:[%s161 + $0x1e0] sm:$0xff]
      %v1028 = vld [vmem:[%s161 + $0x1e8] sm:$0xff]
      %v1029 = vld [vmem:[%s161 + $0x1f0] sm:$0xff]
      %v1030 = vld [vmem:[%s161 + $0x1f8] sm:$0xff]
      %v1031 = vld [vmem:[%s161 + $0x200] sm:$0xff]
      %v1032 = vld [vmem:[%s161 + $0x208] sm:$0xff]
      %v1033 = vld [vmem:[%s161 + $0x210] sm:$0xff]
      %v1034 = vld [vmem:[%s161 + $0x218] sm:$0xff]
      %v1035 = vld [vmem:[%s161 + $0x220] sm:$0xff]
      %v1036 = vld [vmem:[%s161 + $0x228] sm:$0xff]
      %v1037 = vld [vmem:[%s161 + $0x230] sm:$0xff]
      %v1038 = vld [vmem:[%s161 + $0x238] sm:$0xff]
      %v1039 = vld [vmem:[%s161 + $0x240] sm:$0xff]
      %v1040 = vld [vmem:[%s161 + $0x248] sm:$0xff]
      %v1041 = vld [vmem:[%s161 + $0x250] sm:$0xff]
      %v1042 = vld [vmem:[%s161 + $0x258] sm:$0xff]
      %v1043 = vld [vmem:[%s161 + $0x260] sm:$0xff]
      %v1044 = vld [vmem:[%s161 + $0x268] sm:$0xff]
      %v1045 = vld [vmem:[%s161 + $0x270] sm:$0xff]
      %v1046 = vld [vmem:[%s161 + $0x278] sm:$0xff]
      %v1047 = vld [vmem:[%s161 + $0x280] sm:$0xff]
      %v1048 = vld [vmem:[%s161 + $0x288] sm:$0xff]
      %v1049 = vld [vmem:[%s161 + $0x290] sm:$0xff]
      %v1050 = vld [vmem:[%s161 + $0x298] sm:$0xff]
      %v1051 = vld [vmem:[%s161 + $0x2a0] sm:$0xff]
      %v1052 = vld [vmem:[%s161 + $0x2a8] sm:$0xff]
      %v1053 = vld [vmem:[%s161 + $0x2b0] sm:$0xff]
      %v1054 = vld [vmem:[%s161 + $0x2b8] sm:$0xff]
      %v1055 = vld [vmem:[%s161 + $0x2c0] sm:$0xff]
      %v1056 = vld [vmem:[%s161 + $0x2c8] sm:$0xff]
      %v1057 = vld [vmem:[%s161 + $0x2d0] sm:$0xff]
      %v1058 = vld [vmem:[%s161 + $0x2d8] sm:$0xff]
      %v1059 = vld [vmem:[%s161 + $0x2e0] sm:$0xff]
      %v1060 = vld [vmem:[%s161 + $0x2e8] sm:$0xff]
      %v1061 = vld [vmem:[%s161 + $0x2f0] sm:$0xff]
      %v1062 = vld [vmem:[%s161 + $0x2f8] sm:$0xff]
      %v1063 = vld [vmem:[%s161 + $0x300] sm:$0xff]
      %v1064 = vld [vmem:[%s161 + $0x308] sm:$0xff]
      %v1065 = vld [vmem:[%s161 + $0x310] sm:$0xff]
      %v1066 = vld [vmem:[%s161 + $0x318] sm:$0xff]
      %v1067 = vld [vmem:[%s161 + $0x320] sm:$0xff]
      %v1068 = vld [vmem:[%s161 + $0x328] sm:$0xff]
      %v1069 = vld [vmem:[%s161 + $0x330] sm:$0xff]
      %v1070 = vld [vmem:[%s161 + $0x338] sm:$0xff]
      %v1071 = vld [vmem:[%s161 + $0x340] sm:$0xff]
      %v1072 = vld [vmem:[%s161 + $0x348] sm:$0xff]
      %v1073 = vld [vmem:[%s161 + $0x350] sm:$0xff]
      %v1074 = vld [vmem:[%s161 + $0x358] sm:$0xff]
      %v1075 = vld [vmem:[%s161 + $0x360] sm:$0xff]
      %v1076 = vld [vmem:[%s161 + $0x368] sm:$0xff]
      %v1077 = vld [vmem:[%s161 + $0x370] sm:$0xff]
      %v1078 = vld [vmem:[%s161 + $0x378] sm:$0xff]
      %v1079 = vld [vmem:[%s161 + $0x380] sm:$0xff]
      %v1080 = vld [vmem:[%s161 + $0x388] sm:$0xff]
      %1082 = vset.pattern.permute.xlu0 0
      %1083 = vperm.xlu0 %1082, %v740
      %v1084 = vpop.permute.xlu0 %1083
      %1087 = vset.pattern.permute.xlu0 0
      %1088 = vperm.xlu0 %1087, %v742
      %v1089 = vpop.permute.xlu0 %1088
      %1092 = vset.pattern.permute.xlu0 0
      %1093 = vperm.xlu0 %1092, %v744
      %v1094 = vpop.permute.xlu0 %1093
      %1097 = vset.pattern.permute.xlu0 0
      %1098 = vperm.xlu0 %1097, %v746
      %v1099 = vpop.permute.xlu0 %1098
      %1102 = vset.pattern.permute.xlu0 0
      %1103 = vperm.xlu0 %1102, %v748
      %v1104 = vpop.permute.xlu0 %1103
      %1107 = vset.pattern.permute.xlu0 0
      %1108 = vperm.xlu0 %1107, %v750
      %v1109 = vpop.permute.xlu0 %1108
      %1112 = vset.pattern.permute.xlu0 0
      %1113 = vperm.xlu0 %1112, %v752
      %v1114 = vpop.permute.xlu0 %1113
      %1117 = vset.pattern.permute.xlu0 0
      %1118 = vperm.xlu0 %1117, %v754
      %v1119 = vpop.permute.xlu0 %1118
      %1122 = vset.pattern.permute.xlu0 0
      %1123 = vperm.xlu0 %1122, %v756
      %v1124 = vpop.permute.xlu0 %1123
      %1127 = vset.pattern.permute.xlu0 0
      %1128 = vperm.xlu0 %1127, %v758
      %v1129 = vpop.permute.xlu0 %1128
      %1132 = vset.pattern.permute.xlu0 0
      %1133 = vperm.xlu0 %1132, %v760
      %v1134 = vpop.permute.xlu0 %1133
      %1137 = vset.pattern.permute.xlu0 0
      %1138 = vperm.xlu0 %1137, %v762
      %v1139 = vpop.permute.xlu0 %1138
      %1142 = vset.pattern.permute.xlu0 0
      %1143 = vperm.xlu0 %1142, %v764
      %v1144 = vpop.permute.xlu0 %1143
      %1147 = vset.pattern.permute.xlu0 0
      %1148 = vperm.xlu0 %1147, %v766
      %v1149 = vpop.permute.xlu0 %1148
      %1152 = vset.pattern.permute.xlu0 0
      %1153 = vperm.xlu0 %1152, %v768
      %v1154 = vpop.permute.xlu0 %1153
      %1157 = vset.pattern.permute.xlu0 0
      %1158 = vperm.xlu0 %1157, %v770
      %v1159 = vpop.permute.xlu0 %1158
      %1162 = vset.pattern.permute.xlu0 0
      %1163 = vperm.xlu0 %1162, %v772
      %v1164 = vpop.permute.xlu0 %1163
      %1167 = vset.pattern.permute.xlu0 0
      %1168 = vperm.xlu0 %1167, %v774
      %v1169 = vpop.permute.xlu0 %1168
      %1172 = vset.pattern.permute.xlu0 0
      %1173 = vperm.xlu0 %1172, %v776
      %v1174 = vpop.permute.xlu0 %1173
      %1177 = vset.pattern.permute.xlu0 0
      %1178 = vperm.xlu0 %1177, %v778
      %v1179 = vpop.permute.xlu0 %1178
      %1182 = vset.pattern.permute.xlu0 0
      %1183 = vperm.xlu0 %1182, %v780
      %v1184 = vpop.permute.xlu0 %1183
      %1187 = vset.pattern.permute.xlu0 0
      %1188 = vperm.xlu0 %1187, %v782
      %v1189 = vpop.permute.xlu0 %1188
      %1192 = vset.pattern.permute.xlu0 0
      %1193 = vperm.xlu0 %1192, %v784
      %v1194 = vpop.permute.xlu0 %1193
      %1197 = vset.pattern.permute.xlu0 0
      %1198 = vperm.xlu0 %1197, %v786
      %v1199 = vpop.permute.xlu0 %1198
      %1202 = vset.pattern.permute.xlu0 0
      %1203 = vperm.xlu0 %1202, %v788
      %v1204 = vpop.permute.xlu0 %1203
      %1207 = vset.pattern.permute.xlu0 0
      %1208 = vperm.xlu0 %1207, %v790
      %v1209 = vpop.permute.xlu0 %1208
      %1212 = vset.pattern.permute.xlu0 0
      %1213 = vperm.xlu0 %1212, %v792
      %v1214 = vpop.permute.xlu0 %1213
      %1217 = vset.pattern.permute.xlu0 0
      %1218 = vperm.xlu0 %1217, %v794
      %v1219 = vpop.permute.xlu0 %1218
      %1222 = vset.pattern.permute.xlu0 0
      %1223 = vperm.xlu0 %1222, %v796
      %v1224 = vpop.permute.xlu0 %1223
      %1227 = vset.pattern.permute.xlu0 0
      %1228 = vperm.xlu0 %1227, %v798
      %v1229 = vpop.permute.xlu0 %1228
      %1232 = vset.pattern.permute.xlu0 0
      %1233 = vperm.xlu0 %1232, %v800
      %v1234 = vpop.permute.xlu0 %1233
      %1237 = vset.pattern.permute.xlu0 0
      %1238 = vperm.xlu0 %1237, %v802
      %v1239 = vpop.permute.xlu0 %1238
      %1242 = vset.pattern.permute.xlu0 0
      %1243 = vperm.xlu0 %1242, %v804
      %v1244 = vpop.permute.xlu0 %1243
      %1247 = vset.pattern.permute.xlu0 0
      %1248 = vperm.xlu0 %1247, %v806
      %v1249 = vpop.permute.xlu0 %1248
      %1252 = vset.pattern.permute.xlu0 0
      %1253 = vperm.xlu0 %1252, %v808
      %v1254 = vpop.permute.xlu0 %1253
      %1257 = vset.pattern.permute.xlu0 0
      %1258 = vperm.xlu0 %1257, %v810
      %v1259 = vpop.permute.xlu0 %1258
      %1262 = vset.pattern.permute.xlu0 0
      %1263 = vperm.xlu0 %1262, %v812
      %v1264 = vpop.permute.xlu0 %1263
      %1267 = vset.pattern.permute.xlu0 0
      %1268 = vperm.xlu0 %1267, %v814
      %v1269 = vpop.permute.xlu0 %1268
      %1272 = vset.pattern.permute.xlu0 0
      %1273 = vperm.xlu0 %1272, %v816
      %v1274 = vpop.permute.xlu0 %1273
      %1277 = vset.pattern.permute.xlu0 0
      %1278 = vperm.xlu0 %1277, %v818
      %v1279 = vpop.permute.xlu0 %1278
      %1282 = vset.pattern.permute.xlu0 0
      %1283 = vperm.xlu0 %1282, %v820
      %v1284 = vpop.permute.xlu0 %1283
      %1287 = vset.pattern.permute.xlu0 0
      %1288 = vperm.xlu0 %1287, %v822
      %v1289 = vpop.permute.xlu0 %1288
      %1292 = vset.pattern.permute.xlu0 0
      %1293 = vperm.xlu0 %1292, %v824
      %v1294 = vpop.permute.xlu0 %1293
      %1297 = vset.pattern.permute.xlu0 0
      %1298 = vperm.xlu0 %1297, %v826
      %v1299 = vpop.permute.xlu0 %1298
      %1302 = vset.pattern.permute.xlu0 0
      %1303 = vperm.xlu0 %1302, %v828
      %v1304 = vpop.permute.xlu0 %1303
      %1307 = vset.pattern.permute.xlu0 0
      %1308 = vperm.xlu0 %1307, %v830
      %v1309 = vpop.permute.xlu0 %1308
      %1312 = vset.pattern.permute.xlu0 0
      %1313 = vperm.xlu0 %1312, %v832
      %v1314 = vpop.permute.xlu0 %1313
      %1317 = vset.pattern.permute.xlu0 0
      %1318 = vperm.xlu0 %1317, %v834
      %v1319 = vpop.permute.xlu0 %1318
      %1322 = vset.pattern.permute.xlu0 0
      %1323 = vperm.xlu0 %1322, %v836
      %v1324 = vpop.permute.xlu0 %1323
      %1327 = vset.pattern.permute.xlu0 0
      %1328 = vperm.xlu0 %1327, %v838
      %v1329 = vpop.permute.xlu0 %1328
      %1332 = vset.pattern.permute.xlu0 0
      %1333 = vperm.xlu0 %1332, %v840
      %v1334 = vpop.permute.xlu0 %1333
      %1337 = vset.pattern.permute.xlu0 0
      %1338 = vperm.xlu0 %1337, %v842
      %v1339 = vpop.permute.xlu0 %1338
      %1342 = vset.pattern.permute.xlu0 0
      %1343 = vperm.xlu0 %1342, %v844
      %v1344 = vpop.permute.xlu0 %1343
      %1347 = vset.pattern.permute.xlu0 0
      %1348 = vperm.xlu0 %1347, %v846
      %v1349 = vpop.permute.xlu0 %1348
      %1352 = vset.pattern.permute.xlu0 0
      %1353 = vperm.xlu0 %1352, %v848
      %v1354 = vpop.permute.xlu0 %1353
      %1357 = vset.pattern.permute.xlu0 0
      %1358 = vperm.xlu0 %1357, %v850
      %v1359 = vpop.permute.xlu0 %1358
      %1362 = vset.pattern.permute.xlu0 0
      %1363 = vperm.xlu0 %1362, %v852
      %v1364 = vpop.permute.xlu0 %1363
      %1367 = vset.pattern.permute.xlu0 0
      %1368 = vperm.xlu0 %1367, %v854
      %v1369 = vpop.permute.xlu0 %1368
      %1372 = vset.pattern.permute.xlu0 0
      %1373 = vperm.xlu0 %1372, %v856
      %v1374 = vpop.permute.xlu0 %1373
      %1377 = vset.pattern.permute.xlu0 0
      %1378 = vperm.xlu0 %1377, %v858
      %v1379 = vpop.permute.xlu0 %1378
      %1382 = vset.pattern.permute.xlu0 0
      %1383 = vperm.xlu0 %1382, %v860
      %v1384 = vpop.permute.xlu0 %1383
      %1387 = vset.pattern.permute.xlu0 0
      %1388 = vperm.xlu0 %1387, %v862
      %v1389 = vpop.permute.xlu0 %1388
      %1392 = vset.pattern.permute.xlu0 0
      %1393 = vperm.xlu0 %1392, %v864
      %v1394 = vpop.permute.xlu0 %1393
      %1397 = vset.pattern.permute.xlu0 0
      %1398 = vperm.xlu0 %1397, %v866
      %v1399 = vpop.permute.xlu0 %1398
      %1402 = vset.pattern.permute.xlu0 0
      %1403 = vperm.xlu0 %1402, %v868
      %v1404 = vpop.permute.xlu0 %1403
      %1407 = vset.pattern.permute.xlu0 0
      %1408 = vperm.xlu0 %1407, %v870
      %v1409 = vpop.permute.xlu0 %1408
      %1412 = vset.pattern.permute.xlu0 0
      %1413 = vperm.xlu0 %1412, %v872
      %v1414 = vpop.permute.xlu0 %1413
      %1417 = vset.pattern.permute.xlu0 0
      %1418 = vperm.xlu0 %1417, %v874
      %v1419 = vpop.permute.xlu0 %1418
      %1422 = vset.pattern.permute.xlu0 0
      %1423 = vperm.xlu0 %1422, %v876
      %v1424 = vpop.permute.xlu0 %1423
      %1427 = vset.pattern.permute.xlu0 0
      %1428 = vperm.xlu0 %1427, %v878
      %v1429 = vpop.permute.xlu0 %1428
      %1432 = vset.pattern.permute.xlu0 0
      %1433 = vperm.xlu0 %1432, %v880
      %v1434 = vpop.permute.xlu0 %1433
      %1437 = vset.pattern.permute.xlu0 0
      %1438 = vperm.xlu0 %1437, %v882
      %v1439 = vpop.permute.xlu0 %1438
      %1442 = vset.pattern.permute.xlu0 0
      %1443 = vperm.xlu0 %1442, %v884
      %v1444 = vpop.permute.xlu0 %1443
      %1447 = vset.pattern.permute.xlu0 0
      %1448 = vperm.xlu0 %1447, %v886
      %v1449 = vpop.permute.xlu0 %1448
      %1452 = vset.pattern.permute.xlu0 0
      %1453 = vperm.xlu0 %1452, %v888
      %v1454 = vpop.permute.xlu0 %1453
      %1457 = vset.pattern.permute.xlu0 0
      %1458 = vperm.xlu0 %1457, %v890
      %v1459 = vpop.permute.xlu0 %1458
      %1462 = vset.pattern.permute.xlu0 0
      %1463 = vperm.xlu0 %1462, %v892
      %v1464 = vpop.permute.xlu0 %1463
      %1467 = vset.pattern.permute.xlu0 0
      %1468 = vperm.xlu0 %1467, %v894
      %v1469 = vpop.permute.xlu0 %1468
      %1472 = vset.pattern.permute.xlu0 0
      %1473 = vperm.xlu0 %1472, %v896
      %v1474 = vpop.permute.xlu0 %1473
      %1477 = vset.pattern.permute.xlu0 0
      %1478 = vperm.xlu0 %1477, %v898
      %v1479 = vpop.permute.xlu0 %1478
      %1482 = vset.pattern.permute.xlu0 0
      %1483 = vperm.xlu0 %1482, %v900
      %v1484 = vpop.permute.xlu0 %1483
      %1487 = vset.pattern.permute.xlu0 0
      %1488 = vperm.xlu0 %1487, %v902
      %v1489 = vpop.permute.xlu0 %1488
      %1492 = vset.pattern.permute.xlu0 0
      %1493 = vperm.xlu0 %1492, %v904
      %v1494 = vpop.permute.xlu0 %1493
      %1497 = vset.pattern.permute.xlu0 0
      %1498 = vperm.xlu0 %1497, %v906
      %v1499 = vpop.permute.xlu0 %1498
      %1502 = vset.pattern.permute.xlu0 0
      %1503 = vperm.xlu0 %1502, %v908
      %v1504 = vpop.permute.xlu0 %1503
      %1507 = vset.pattern.permute.xlu0 0
      %1508 = vperm.xlu0 %1507, %v910
      %v1509 = vpop.permute.xlu0 %1508
      %1512 = vset.pattern.permute.xlu0 0
      %1513 = vperm.xlu0 %1512, %v912
      %v1514 = vpop.permute.xlu0 %1513
      %1517 = vset.pattern.permute.xlu0 0
      %1518 = vperm.xlu0 %1517, %v914
      %v1519 = vpop.permute.xlu0 %1518
      %1522 = vset.pattern.permute.xlu0 0
      %1523 = vperm.xlu0 %1522, %v916
      %v1524 = vpop.permute.xlu0 %1523
      %1527 = vset.pattern.permute.xlu0 0
      %1528 = vperm.xlu0 %1527, %v918
      %v1529 = vpop.permute.xlu0 %1528
      %1532 = vset.pattern.permute.xlu0 0
      %1533 = vperm.xlu0 %1532, %v920
      %v1534 = vpop.permute.xlu0 %1533
      %1537 = vset.pattern.permute.xlu0 0
      %1538 = vperm.xlu0 %1537, %v922
      %v1539 = vpop.permute.xlu0 %1538
      %1542 = vset.pattern.permute.xlu0 0
      %1543 = vperm.xlu0 %1542, %v924
      %v1544 = vpop.permute.xlu0 %1543
      %1547 = vset.pattern.permute.xlu0 0
      %1548 = vperm.xlu0 %1547, %v926
      %v1549 = vpop.permute.xlu0 %1548
      %1552 = vset.pattern.permute.xlu0 0
      %1553 = vperm.xlu0 %1552, %v928
      %v1554 = vpop.permute.xlu0 %1553
      %1557 = vset.pattern.permute.xlu0 0
      %1558 = vperm.xlu0 %1557, %v930
      %v1559 = vpop.permute.xlu0 %1558
      %1562 = vset.pattern.permute.xlu0 0
      %1563 = vperm.xlu0 %1562, %v932
      %v1564 = vpop.permute.xlu0 %1563
      %1567 = vset.pattern.permute.xlu0 0
      %1568 = vperm.xlu0 %1567, %v934
      %v1569 = vpop.permute.xlu0 %1568
      %1572 = vset.pattern.permute.xlu0 0
      %1573 = vperm.xlu0 %1572, %v936
      %v1574 = vpop.permute.xlu0 %1573
      %1577 = vset.pattern.permute.xlu0 0
      %1578 = vperm.xlu0 %1577, %v938
      %v1579 = vpop.permute.xlu0 %1578
      %1582 = vset.pattern.permute.xlu0 0
      %1583 = vperm.xlu0 %1582, %v940
      %v1584 = vpop.permute.xlu0 %1583
      %1587 = vset.pattern.permute.xlu0 0
      %1588 = vperm.xlu0 %1587, %v942
      %v1589 = vpop.permute.xlu0 %1588
      %1592 = vset.pattern.permute.xlu0 0
      %1593 = vperm.xlu0 %1592, %v944
      %v1594 = vpop.permute.xlu0 %1593
      %1597 = vset.pattern.permute.xlu0 0
      %1598 = vperm.xlu0 %1597, %v946
      %v1599 = vpop.permute.xlu0 %1598
      %1602 = vset.pattern.permute.xlu0 0
      %1603 = vperm.xlu0 %1602, %v948
      %v1604 = vpop.permute.xlu0 %1603
      %1607 = vset.pattern.permute.xlu0 0
      %1608 = vperm.xlu0 %1607, %v950
      %v1609 = vpop.permute.xlu0 %1608
      %1612 = vset.pattern.permute.xlu0 0
      %1613 = vperm.xlu0 %1612, %v952
      %v1614 = vpop.permute.xlu0 %1613
      %1617 = vset.pattern.permute.xlu0 0
      %1618 = vperm.xlu0 %1617, %v954
      %v1619 = vpop.permute.xlu0 %1618
      %1622 = vset.pattern.permute.xlu0 0
      %1623 = vperm.xlu0 %1622, %v956
      %v1624 = vpop.permute.xlu0 %1623
      %1627 = vset.pattern.permute.xlu0 0
      %1628 = vperm.xlu0 %1627, %v958
      %v1629 = vpop.permute.xlu0 %1628
      %1632 = vset.pattern.permute.xlu0 0
      %1633 = vperm.xlu0 %1632, %v960
      %v1634 = vpop.permute.xlu0 %1633
      %1637 = vset.pattern.permute.xlu0 0
      %1638 = vperm.xlu0 %1637, %v962
      %v1639 = vpop.permute.xlu0 %1638
      %1642 = vset.pattern.permute.xlu0 0
      %1643 = vperm.xlu0 %1642, %v964
      %v1644 = vpop.permute.xlu0 %1643
      %1647 = vset.pattern.permute.xlu0 0
      %1648 = vperm.xlu0 %1647, %v966
      %v1649 = vpop.permute.xlu0 %1648
      %v1651 = vmul.f32 %v967, %v1084
      %v1652 = vmul.f32 %v968, %v1089
      %v1653 = vmul.f32 %v969, %v1094
      %v1654 = vmul.f32 %v970, %v1099
      %v1655 = vmul.f32 %v971, %v1104
      %v1656 = vmul.f32 %v972, %v1109
      %v1657 = vmul.f32 %v973, %v1114
      %v1658 = vmul.f32 %v974, %v1119
      %v1659 = vmul.f32 %v975, %v1124
      %v1660 = vmul.f32 %v976, %v1129
      %v1661 = vmul.f32 %v977, %v1134
      %v1662 = vmul.f32 %v978, %v1139
      %v1663 = vmul.f32 %v979, %v1144
      %v1664 = vmul.f32 %v980, %v1149
      %v1665 = vmul.f32 %v981, %v1154
      %v1666 = vmul.f32 %v982, %v1159
      %v1667 = vmul.f32 %v983, %v1164
      %v1668 = vmul.f32 %v984, %v1169
      %v1669 = vmul.f32 %v985, %v1174
      %v1670 = vmul.f32 %v986, %v1179
      %v1671 = vmul.f32 %v987, %v1184
      %v1672 = vmul.f32 %v988, %v1189
      %v1673 = vmul.f32 %v989, %v1194
      %v1674 = vmul.f32 %v990, %v1199
      %v1675 = vmul.f32 %v991, %v1204
      %v1676 = vmul.f32 %v992, %v1209
      %v1677 = vmul.f32 %v993, %v1214
      %v1678 = vmul.f32 %v994, %v1219
      %v1679 = vmul.f32 %v995, %v1224
      %v1680 = vmul.f32 %v996, %v1229
      %v1681 = vmul.f32 %v997, %v1234
      %v1682 = vmul.f32 %v998, %v1239
      %v1683 = vmul.f32 %v999, %v1244
      %v1684 = vmul.f32 %v1000, %v1249
      %v1685 = vmul.f32 %v1001, %v1254
      %v1686 = vmul.f32 %v1002, %v1259
      %v1687 = vmul.f32 %v1003, %v1264
      %v1688 = vmul.f32 %v1004, %v1269
      %v1689 = vmul.f32 %v1005, %v1274
      %v1690 = vmul.f32 %v1006, %v1279
      %v1691 = vmul.f32 %v1007, %v1284
      %v1692 = vmul.f32 %v1008, %v1289
      %v1693 = vmul.f32 %v1009, %v1294
      %v1694 = vmul.f32 %v1010, %v1299
      %v1695 = vmul.f32 %v1011, %v1304
      %v1696 = vmul.f32 %v1012, %v1309
      %v1697 = vmul.f32 %v1013, %v1314
      %v1698 = vmul.f32 %v1014, %v1319
      %v1699 = vmul.f32 %v1015, %v1324
      %v1700 = vmul.f32 %v1016, %v1329
      %v1701 = vmul.f32 %v1017, %v1334
      %v1702 = vmul.f32 %v1018, %v1339
      %v1703 = vmul.f32 %v1019, %v1344
      %v1704 = vmul.f32 %v1020, %v1349
      %v1705 = vmul.f32 %v1021, %v1354
      %v1706 = vmul.f32 %v1022, %v1359
      %v1707 = vmul.f32 %v1023, %v1364
      %v1708 = vmul.f32 %v1024, %v1369
      %v1709 = vmul.f32 %v1025, %v1374
      %v1710 = vmul.f32 %v1026, %v1379
      %v1711 = vmul.f32 %v1027, %v1384
      %v1712 = vmul.f32 %v1028, %v1389
      %v1713 = vmul.f32 %v1029, %v1394
      %v1714 = vmul.f32 %v1030, %v1399
      %v1715 = vmul.f32 %v1031, %v1404
      %v1716 = vmul.f32 %v1032, %v1409
      %v1717 = vmul.f32 %v1033, %v1414
      %v1718 = vmul.f32 %v1034, %v1419
      %v1719 = vmul.f32 %v1035, %v1424
      %v1720 = vmul.f32 %v1036, %v1429
      %v1721 = vmul.f32 %v1037, %v1434
      %v1722 = vmul.f32 %v1038, %v1439
      %v1723 = vmul.f32 %v1039, %v1444
      %v1724 = vmul.f32 %v1040, %v1449
      %v1725 = vmul.f32 %v1041, %v1454
      %v1726 = vmul.f32 %v1042, %v1459
      %v1727 = vmul.f32 %v1043, %v1464
      %v1728 = vmul.f32 %v1044, %v1469
      %v1729 = vmul.f32 %v1045, %v1474
      %v1730 = vmul.f32 %v1046, %v1479
      %v1731 = vmul.f32 %v1047, %v1484
      %v1732 = vmul.f32 %v1048, %v1489
      %v1733 = vmul.f32 %v1049, %v1494
      %v1734 = vmul.f32 %v1050, %v1499
      %v1735 = vmul.f32 %v1051, %v1504
      %v1736 = vmul.f32 %v1052, %v1509
      %v1737 = vmul.f32 %v1053, %v1514
      %v1738 = vmul.f32 %v1054, %v1519
      %v1739 = vmul.f32 %v1055, %v1524
      %v1740 = vmul.f32 %v1056, %v1529
      %v1741 = vmul.f32 %v1057, %v1534
      %v1742 = vmul.f32 %v1058, %v1539
      %v1743 = vmul.f32 %v1059, %v1544
      %v1744 = vmul.f32 %v1060, %v1549
      %v1745 = vmul.f32 %v1061, %v1554
      %v1746 = vmul.f32 %v1062, %v1559
      %v1747 = vmul.f32 %v1063, %v1564
      %v1748 = vmul.f32 %v1064, %v1569
      %v1749 = vmul.f32 %v1065, %v1574
      %v1750 = vmul.f32 %v1066, %v1579
      %v1751 = vmul.f32 %v1067, %v1584
      %v1752 = vmul.f32 %v1068, %v1589
      %v1753 = vmul.f32 %v1069, %v1594
      %v1754 = vmul.f32 %v1070, %v1599
      %v1755 = vmul.f32 %v1071, %v1604
      %v1756 = vmul.f32 %v1072, %v1609
      %v1757 = vmul.f32 %v1073, %v1614
      %v1758 = vmul.f32 %v1074, %v1619
      %v1759 = vmul.f32 %v1075, %v1624
      %v1760 = vmul.f32 %v1076, %v1629
      %v1761 = vmul.f32 %v1077, %v1634
      %v1762 = vmul.f32 %v1078, %v1639
      %v1763 = vmul.f32 %v1079, %v1644
      %v1764 = vmul.f32 %v1080, %v1649
      %vm1765 = vcmask 400384
      %1766 = vst.msk [vmem:[%s167] sm:$0xff] %vm1765, %v1651
      %1767 = vst.msk [vmem:[%s167 + $0x8] sm:$0xff] %vm1765, %v1652
      %1768 = vst.msk [vmem:[%s167 + $0x10] sm:$0xff] %vm1765, %v1653
      %1769 = vst.msk [vmem:[%s167 + $0x18] sm:$0xff] %vm1765, %v1654
      %1770 = vst.msk [vmem:[%s167 + $0x20] sm:$0xff] %vm1765, %v1655
      %1771 = vst.msk [vmem:[%s167 + $0x28] sm:$0xff] %vm1765, %v1656
      %1772 = vst.msk [vmem:[%s167 + $0x30] sm:$0xff] %vm1765, %v1657
      %1773 = vst.msk [vmem:[%s167 + $0x38] sm:$0xff] %vm1765, %v1658
      %1774 = vst.msk [vmem:[%s167 + $0x40] sm:$0xff] %vm1765, %v1659
      %1775 = vst.msk [vmem:[%s167 + $0x48] sm:$0xff] %vm1765, %v1660
      %1776 = vst.msk [vmem:[%s167 + $0x50] sm:$0xff] %vm1765, %v1661
      %1777 = vst.msk [vmem:[%s167 + $0x58] sm:$0xff] %vm1765, %v1662
      %1778 = vst.msk [vmem:[%s167 + $0x60] sm:$0xff] %vm1765, %v1663
      %1779 = vst.msk [vmem:[%s167 + $0x68] sm:$0xff] %vm1765, %v1664
      %1780 = vst.msk [vmem:[%s167 + $0x70] sm:$0xff] %vm1765, %v1665
      %1781 = vst.msk [vmem:[%s167 + $0x78] sm:$0xff] %vm1765, %v1666
      %1782 = vst.msk [vmem:[%s167 + $0x80] sm:$0xff] %vm1765, %v1667
      %1783 = vst.msk [vmem:[%s167 + $0x88] sm:$0xff] %vm1765, %v1668
      %1784 = vst.msk [vmem:[%s167 + $0x90] sm:$0xff] %vm1765, %v1669
      %1785 = vst.msk [vmem:[%s167 + $0x98] sm:$0xff] %vm1765, %v1670
      %1786 = vst.msk [vmem:[%s167 + $0xa0] sm:$0xff] %vm1765, %v1671
      %1787 = vst.msk [vmem:[%s167 + $0xa8] sm:$0xff] %vm1765, %v1672
      %1788 = vst.msk [vmem:[%s167 + $0xb0] sm:$0xff] %vm1765, %v1673
      %1789 = vst.msk [vmem:[%s167 + $0xb8] sm:$0xff] %vm1765, %v1674
      %1790 = vst.msk [vmem:[%s167 + $0xc0] sm:$0xff] %vm1765, %v1675
      %1791 = vst.msk [vmem:[%s167 + $0xc8] sm:$0xff] %vm1765, %v1676
      %1792 = vst.msk [vmem:[%s167 + $0xd0] sm:$0xff] %vm1765, %v1677
      %1793 = vst.msk [vmem:[%s167 + $0xd8] sm:$0xff] %vm1765, %v1678
      %1794 = vst.msk [vmem:[%s167 + $0xe0] sm:$0xff] %vm1765, %v1679
      %1795 = vst.msk [vmem:[%s167 + $0xe8] sm:$0xff] %vm1765, %v1680
      %1796 = vst.msk [vmem:[%s167 + $0xf0] sm:$0xff] %vm1765, %v1681
      %1797 = vst.msk [vmem:[%s167 + $0xf8] sm:$0xff] %vm1765, %v1682
      %1798 = vst.msk [vmem:[%s167 + $0x100] sm:$0xff] %vm1765, %v1683
      %1799 = vst.msk [vmem:[%s167 + $0x108] sm:$0xff] %vm1765, %v1684
      %1800 = vst.msk [vmem:[%s167 + $0x110] sm:$0xff] %vm1765, %v1685
      %1801 = vst.msk [vmem:[%s167 + $0x118] sm:$0xff] %vm1765, %v1686
      %1802 = vst.msk [vmem:[%s167 + $0x120] sm:$0xff] %vm1765, %v1687
      %1803 = vst.msk [vmem:[%s167 + $0x128] sm:$0xff] %vm1765, %v1688
      %1804 = vst.msk [vmem:[%s167 + $0x130] sm:$0xff] %vm1765, %v1689
      %1805 = vst.msk [vmem:[%s167 + $0x138] sm:$0xff] %vm1765, %v1690
      %1806 = vst.msk [vmem:[%s167 + $0x140] sm:$0xff] %vm1765, %v1691
      %1807 = vst.msk [vmem:[%s167 + $0x148] sm:$0xff] %vm1765, %v1692
      %1808 = vst.msk [vmem:[%s167 + $0x150] sm:$0xff] %vm1765, %v1693
      %1809 = vst.msk [vmem:[%s167 + $0x158] sm:$0xff] %vm1765, %v1694
      %1810 = vst.msk [vmem:[%s167 + $0x160] sm:$0xff] %vm1765, %v1695
      %1811 = vst.msk [vmem:[%s167 + $0x168] sm:$0xff] %vm1765, %v1696
      %1812 = vst.msk [vmem:[%s167 + $0x170] sm:$0xff] %vm1765, %v1697
      %1813 = vst.msk [vmem:[%s167 + $0x178] sm:$0xff] %vm1765, %v1698
      %1814 = vst.msk [vmem:[%s167 + $0x180] sm:$0xff] %vm1765, %v1699
      %1815 = vst.msk [vmem:[%s167 + $0x188] sm:$0xff] %vm1765, %v1700
      %1816 = vst.msk [vmem:[%s167 + $0x190] sm:$0xff] %vm1765, %v1701
      %1817 = vst.msk [vmem:[%s167 + $0x198] sm:$0xff] %vm1765, %v1702
      %1818 = vst.msk [vmem:[%s167 + $0x1a0] sm:$0xff] %vm1765, %v1703
      %1819 = vst.msk [vmem:[%s167 + $0x1a8] sm:$0xff] %vm1765, %v1704
      %1820 = vst.msk [vmem:[%s167 + $0x1b0] sm:$0xff] %vm1765, %v1705
      %1821 = vst.msk [vmem:[%s167 + $0x1b8] sm:$0xff] %vm1765, %v1706
      %1822 = vst.msk [vmem:[%s167 + $0x1c0] sm:$0xff] %vm1765, %v1707
      %1823 = vst.msk [vmem:[%s167 + $0x1c8] sm:$0xff] %vm1765, %v1708
      %1824 = vst.msk [vmem:[%s167 + $0x1d0] sm:$0xff] %vm1765, %v1709
      %1825 = vst.msk [vmem:[%s167 + $0x1d8] sm:$0xff] %vm1765, %v1710
      %1826 = vst.msk [vmem:[%s167 + $0x1e0] sm:$0xff] %vm1765, %v1711
      %1827 = vst.msk [vmem:[%s167 + $0x1e8] sm:$0xff] %vm1765, %v1712
      %1828 = vst.msk [vmem:[%s167 + $0x1f0] sm:$0xff] %vm1765, %v1713
      %1829 = vst.msk [vmem:[%s167 + $0x1f8] sm:$0xff] %vm1765, %v1714
      %1830 = vst.msk [vmem:[%s167 + $0x200] sm:$0xff] %vm1765, %v1715
      %1831 = vst.msk [vmem:[%s167 + $0x208] sm:$0xff] %vm1765, %v1716
      %1832 = vst.msk [vmem:[%s167 + $0x210] sm:$0xff] %vm1765, %v1717
      %1833 = vst.msk [vmem:[%s167 + $0x218] sm:$0xff] %vm1765, %v1718
      %1834 = vst.msk [vmem:[%s167 + $0x220] sm:$0xff] %vm1765, %v1719
      %1835 = vst.msk [vmem:[%s167 + $0x228] sm:$0xff] %vm1765, %v1720
      %1836 = vst.msk [vmem:[%s167 + $0x230] sm:$0xff] %vm1765, %v1721
      %1837 = vst.msk [vmem:[%s167 + $0x238] sm:$0xff] %vm1765, %v1722
      %1838 = vst.msk [vmem:[%s167 + $0x240] sm:$0xff] %vm1765, %v1723
      %1839 = vst.msk [vmem:[%s167 + $0x248] sm:$0xff] %vm1765, %v1724
      %1840 = vst.msk [vmem:[%s167 + $0x250] sm:$0xff] %vm1765, %v1725
      %1841 = vst.msk [vmem:[%s167 + $0x258] sm:$0xff] %vm1765, %v1726
      %1842 = vst.msk [vmem:[%s167 + $0x260] sm:$0xff] %vm1765, %v1727
      %1843 = vst.msk [vmem:[%s167 + $0x268] sm:$0xff] %vm1765, %v1728
      %1844 = vst.msk [vmem:[%s167 + $0x270] sm:$0xff] %vm1765, %v1729
      %1845 = vst.msk [vmem:[%s167 + $0x278] sm:$0xff] %vm1765, %v1730
      %1846 = vst.msk [vmem:[%s167 + $0x280] sm:$0xff] %vm1765, %v1731
      %1847 = vst.msk [vmem:[%s167 + $0x288] sm:$0xff] %vm1765, %v1732
      %1848 = vst.msk [vmem:[%s167 + $0x290] sm:$0xff] %vm1765, %v1733
      %1849 = vst.msk [vmem:[%s167 + $0x298] sm:$0xff] %vm1765, %v1734
      %1850 = vst.msk [vmem:[%s167 + $0x2a0] sm:$0xff] %vm1765, %v1735
      %1851 = vst.msk [vmem:[%s167 + $0x2a8] sm:$0xff] %vm1765, %v1736
      %1852 = vst.msk [vmem:[%s167 + $0x2b0] sm:$0xff] %vm1765, %v1737
      %1853 = vst.msk [vmem:[%s167 + $0x2b8] sm:$0xff] %vm1765, %v1738
      %1854 = vst.msk [vmem:[%s167 + $0x2c0] sm:$0xff] %vm1765, %v1739
      %1855 = vst.msk [vmem:[%s167 + $0x2c8] sm:$0xff] %vm1765, %v1740
      %1856 = vst.msk [vmem:[%s167 + $0x2d0] sm:$0xff] %vm1765, %v1741
      %1857 = vst.msk [vmem:[%s167 + $0x2d8] sm:$0xff] %vm1765, %v1742
      %1858 = vst.msk [vmem:[%s167 + $0x2e0] sm:$0xff] %vm1765, %v1743
      %1859 = vst.msk [vmem:[%s167 + $0x2e8] sm:$0xff] %vm1765, %v1744
      %1860 = vst.msk [vmem:[%s167 + $0x2f0] sm:$0xff] %vm1765, %v1745
      %1861 = vst.msk [vmem:[%s167 + $0x2f8] sm:$0xff] %vm1765, %v1746
      %1862 = vst.msk [vmem:[%s167 + $0x300] sm:$0xff] %vm1765, %v1747
      %1863 = vst.msk [vmem:[%s167 + $0x308] sm:$0xff] %vm1765, %v1748
      %1864 = vst.msk [vmem:[%s167 + $0x310] sm:$0xff] %vm1765, %v1749
      %1865 = vst.msk [vmem:[%s167 + $0x318] sm:$0xff] %vm1765, %v1750
      %1866 = vst.msk [vmem:[%s167 + $0x320] sm:$0xff] %vm1765, %v1751
      %1867 = vst.msk [vmem:[%s167 + $0x328] sm:$0xff] %vm1765, %v1752
      %1868 = vst.msk [vmem:[%s167 + $0x330] sm:$0xff] %vm1765, %v1753
      %1869 = vst.msk [vmem:[%s167 + $0x338] sm:$0xff] %vm1765, %v1754
      %1870 = vst.msk [vmem:[%s167 + $0x340] sm:$0xff] %vm1765, %v1755
      %1871 = vst.msk [vmem:[%s167 + $0x348] sm:$0xff] %vm1765, %v1756
      %1872 = vst.msk [vmem:[%s167 + $0x350] sm:$0xff] %vm1765, %v1757
      %1873 = vst.msk [vmem:[%s167 + $0x358] sm:$0xff] %vm1765, %v1758
      %1874 = vst.msk [vmem:[%s167 + $0x360] sm:$0xff] %vm1765, %v1759
      %1875 = vst.msk [vmem:[%s167 + $0x368] sm:$0xff] %vm1765, %v1760
      %1876 = vst.msk [vmem:[%s167 + $0x370] sm:$0xff] %vm1765, %v1761
      %1877 = vst.msk [vmem:[%s167 + $0x378] sm:$0xff] %vm1765, %v1762
      %1878 = vst.msk [vmem:[%s167 + $0x380] sm:$0xff] %vm1765, %v1763
      %1879 = vst.msk [vmem:[%s167 + $0x388] sm:$0xff] %vm1765, %v1764
      %s1880 = smul.u32 114, %s13
      %p1881 = scmp.lt.s32.totalorder %s1880, 227
      %s1882 = scalar_select %p1881, %s1880, 227
      %s1883 = smul.addr %s1882, 8
      %s1884 = scalar_lea.vmem %s2, %s1883
      // Predicated region
      $region29: #{tpu_custom_call.1} parent=27 // pred_check
        %p1885 = pneg %p83
      $region30: #{tpu_custom_call.1} parent=27 // pred_check_branch
        %1887 = sbr.rel (%p1885) target = $region32
      $region31: #{tpu_custom_call.1} parent=27 // pred_region
        %s1888 = smul.u32 114, %s13
      $region32: #{tpu_custom_call.1} parent=27 // pred_fallthru
        _
    $region28: #{tpu_custom_call.1} parent=5 // pred_fallthru
      _
    %p1889 = scmp.le.s32.totalorder 2, %s8
    // Predicated region
    $region33: #{tpu_custom_call.1} parent=5 // pred_check
      %p1890 = pneg %p1889
    $region34: #{tpu_custom_call.1} parent=5 // pred_check_branch
      %1892 = sbr.rel (%p1890) target = $region36
    $region35: #{tpu_custom_call.1} parent=5 // pred_region
      %s1893 = ssub.s32 %s8, 2
      // Predicated region
      $region37: #{tpu_custom_call.1} parent=35 // pred_check
        %p1894 = pneg %p89
      $region38: #{tpu_custom_call.1} parent=35 // pred_check_branch
        %1896 = sbr.rel (%p1894) target = $region40
      $region39: #{tpu_custom_call.1} parent=35 // pred_region
        %s1897 = smul.u32 114, %s14
        %p1898 = scmp.lt.s32.totalorder %s1897, 227
        %s1899 = scalar_select %p1898, %s1897, 227
        %s1900 = smul.addr %s1899, 8
        %s1901 = scalar_lea.vmem %s2, %s1900
      $region40: #{tpu_custom_call.1} parent=35 // pred_fallthru
        _
    $region36: #{tpu_custom_call.1} parent=5 // pred_fallthru
      _
  $region6: #{tpu_custom_call.1} parent=0 // loop_footer
    %s12 = sadd.s32 1, %s8
  $region7: #{tpu_custom_call.1} parent=0 // loop_footer_branch
    %7 = sbr.rel target = $region3
  $region8: #{tpu_custom_call.1} parent=0 // loop_exit
    _

</llo_original>
